<compile_context>
chip_gen: v6e
topology: v6e:2x2x1
jax: 0.10.0
libtpu: 0.0.40
codegen_flags: <defaults>
</compile_context>

<pallas_src>
import math
from functools import partial

import jax
import jax.numpy as jnp
from jax import lax
from jax.experimental import pallas as pl
from jax.experimental.pallas import tpu as pltpu


def _cross_attention_kernel(q_ref, k_ref, v_ref,
                            wqt_ref, wkt_ref, wvt_ref,
                            wpt_ref, bp_ref,
                            o_ref, *, scale, num_heads):
    """One grid step = one batch element; all heads computed in this body.

    Block shapes:
      q_ref/k_ref/v_ref : (1, N, C)  activations for batch b
      wqt/wkt/wvt_ref   : (C, C)     pre-transposed Linear weights (x @ W.T == x @ Wt)
      wpt_ref           : (C, C)     pre-transposed proj weight
      bp_ref            : (1, C)     proj bias (f32)
      o_ref             : (1, N, C)  output for batch b (written exactly once)
    """
    cdt = wqt_ref.dtype                      # MXU operand dtype (f32 or bf16)

    q = q_ref[0]                             # (N, C)
    k = k_ref[0]
    v = v_ref[0]

    # Full-width projections: one (N, C) x (C, C) matmul each (all heads at once).
    qp = jnp.dot(q, wqt_ref[...], preferred_element_type=jnp.float32)
    kp = jnp.dot(k, wkt_ref[...], preferred_element_type=jnp.float32)
    vp = jnp.dot(v, wvt_ref[...], preferred_element_type=jnp.float32)

    qp = qp * scale                          # fold the attention scale in once

    N, C = qp.shape
    hd = C // num_heads

    # Per-head attention, statically unrolled; 2-D tiles only (no 3-D reshape
    # or transpose inside the kernel).
    head_outs = []
    for h in range(num_heads):
        lo = h * hd
        qh = qp[:, lo:lo + hd].astype(cdt)   # (N, hd), static lane slice
        kh = kp[:, lo:lo + hd].astype(cdt)
        vh = vp[:, lo:lo + hd].astype(cdt)

        # s = qh @ kh.T via dot_general dimension numbers (no materialized .T).
        s = lax.dot_general(qh, kh, (((1,), (1,)), ((), ())),
                            preferred_element_type=jnp.float32)      # (N, N)
        s = s - jnp.max(s, axis=-1, keepdims=True)
        p = jnp.exp(s)
        p = p * pl.reciprocal(jnp.sum(p, axis=-1, keepdims=True), approx=True)

        head_outs.append(jnp.dot(p.astype(cdt), vh,
                                 preferred_element_type=jnp.float32))  # (N, hd)

    attn_out = jnp.concatenate(head_outs, axis=-1)                     # (N, C)

    # Single full-width output projection + bias; write the block exactly once.
    out = jnp.dot(attn_out.astype(cdt), wpt_ref[...],
                  preferred_element_type=jnp.float32) + bp_ref[...]
    o_ref[0] = out.astype(o_ref.dtype)


def cross_attention_pallas(q, k, v, wq, wk, wv, wp, bp, num_heads,
                           compute_dtype=jnp.float32):
    """compute_dtype=jnp.bfloat16 gives MXU-native operands on v6e/v7x
    (accumulation stays f32); default f32 matches the PyTorch module closely."""
    B, N, C = q.shape
    hd = C // num_heads
    scale = hd ** (-0.5)

    # Pre-transpose weights in the wrapper (pure layout plumbing, no in-kernel XLU).
    wqt = wq.T.astype(compute_dtype)
    wkt = wk.T.astype(compute_dtype)
    wvt = wv.T.astype(compute_dtype)
    wpt = wp.T.astype(compute_dtype)
    bp2 = bp.reshape(1, C).astype(jnp.float32)

    qc = q.astype(compute_dtype)
    kc = k.astype(compute_dtype)
    vc = v.astype(compute_dtype)

    kernel = partial(_cross_attention_kernel, scale=scale, num_heads=num_heads)

    const_map2 = lambda b: (0, 0)            # weights stay VMEM-resident across grid

    return pl.pallas_call(
        kernel,
        out_shape=jax.ShapeDtypeStruct((B, N, C), jnp.float32),
        grid_spec=pltpu.PrefetchScalarGridSpec(
            num_scalar_prefetch=0,
            grid=(B,),                                        # one step per batch
            in_specs=[
                pl.BlockSpec((1, N, C), lambda b: (b, 0, 0)),   # q
                pl.BlockSpec((1, N, C), lambda b: (b, 0, 0)),   # k
                pl.BlockSpec((1, N, C), lambda b: (b, 0, 0)),   # v
                pl.BlockSpec((C, C), const_map2),               # Wq^T
                pl.BlockSpec((C, C), const_map2),               # Wk^T
                pl.BlockSpec((C, C), const_map2),               # Wv^T
                pl.BlockSpec((C, C), const_map2),               # Wp^T
                pl.BlockSpec((1, C), const_map2),               # proj bias
            ],
            out_specs=pl.BlockSpec((1, N, C), lambda b: (b, 0, 0)),
        ),
        compiler_params=pltpu.CompilerParams(
            dimension_semantics=("parallel",)),   # batch axis can feed both v7x TCs
    )(qc, kc, vc, wqt, wkt, wvt, wpt, bp2)


def cross_attention_ref(q, k, v, wq, wk, wv, wp, bp, num_heads):
    """Pure-JAX reference mirroring the PyTorch forward."""
    B, N, C = q.shape
    hd = C // num_heads
    scale = hd ** (-0.5)
    qp = q @ wq.T
    kp = k @ wk.T
    vp = v @ wv.T

    def split_heads(x):
        return x.reshape(B, N, num_heads, hd).transpose(0, 2, 1, 3)

    qh, kh, vh = split_heads(qp), split_heads(kp), split_heads(vp)
    attn = jax.nn.softmax(qh @ kh.transpose(0, 1, 3, 2) * scale, axis=-1)
    out = (attn @ vh).transpose(0, 2, 1, 3).reshape(B, N, C)
    return out @ wp.T + bp


if __name__ == "__main__":
    # Small shapes consistent with the module: dim must be divisible by num_heads.
    B, N, C = 2, 8, 32
    num_heads = 4

    key = jax.random.PRNGKey(0)
    kq, kk, kv, kwq, kwk, kwv, kwp, kbp = jax.random.split(key, 8)

    q = jax.random.normal(kq, (B, N, C), dtype=jnp.float32)
    k = jax.random.normal(kk, (B, N, C), dtype=jnp.float32)
    v = jax.random.normal(kv, (B, N, C), dtype=jnp.float32)

    # Deterministic parameter init mimicking nn.Linear default (uniform +-1/sqrt(fan_in)).
    bound = 1.0 / math.sqrt(C)
    wq = jax.random.uniform(kwq, (C, C), jnp.float32, -bound, bound)   # proj_q.weight (out,in)
    wk = jax.random.uniform(kwk, (C, C), jnp.float32, -bound, bound)   # proj_k.weight
    wv = jax.random.uniform(kwv, (C, C), jnp.float32, -bound, bound)   # proj_v.weight
    wp = jax.random.uniform(kwp, (C, C), jnp.float32, -bound, bound)   # proj.weight
    bp = jax.random.uniform(kbp, (C,), jnp.float32, -bound, bound)     # proj.bias
    # qkv_bias=False -> no biases for proj_q/proj_k/proj_v.
    # attn_drop / proj_drop default 0.0 -> identity (eval), not emitted as ops.

    out = cross_attention_pallas(q, k, v, wq, wk, wv, wp, bp, num_heads)
    out = jax.block_until_ready(out)

    ref = cross_attention_ref(q, k, v, wq, wk, wv, wp, bp, num_heads)
    assert out.shape == (B, N, C)
    # Tolerance relaxed from 1e-5 because of pl.reciprocal(approx=True) in softmax.
    assert jnp.allclose(out, ref, atol=5e-3, rtol=5e-3), "mismatch vs reference"

    print("KERNEL_OK")
</pallas_src>

<mosaic_0001>
module attributes {stable_mosaic.version = 11 : i64} {
  func.func @_cross_attention_kernel(%arg0: i32, %arg1: memref<1x8x32xf32, #tpu.memory_space<vmem>>, %arg2: memref<1x8x32xf32, #tpu.memory_space<vmem>>, %arg3: memref<1x8x32xf32, #tpu.memory_space<vmem>>, %arg4: memref<32x32xf32, #tpu.memory_space<vmem>>, %arg5: memref<32x32xf32, #tpu.memory_space<vmem>>, %arg6: memref<32x32xf32, #tpu.memory_space<vmem>>, %arg7: memref<32x32xf32, #tpu.memory_space<vmem>>, %arg8: memref<1x32xf32, #tpu.memory_space<vmem>>, %arg9: memref<1x8x32xf32, #tpu.memory_space<vmem>>) attributes {dimension_semantics = [#tpu.dimension_semantics<parallel>], iteration_bounds = array<i64: 2>, scalar_prefetch = 0 : i64, scratch_operands = 0 : i64, tpu.core_type = #tpu.core_type<tc>, window_params = [{transform_indices = @transform_0, window_bounds = array<i64: 1, 8, 32>}, {transform_indices = @transform_1, window_bounds = array<i64: 1, 8, 32>}, {transform_indices = @transform_2, window_bounds = array<i64: 1, 8, 32>}, {pipeline_mode = #tpu.pipeline_mode<synchronous>, transform_indices = @transform_3, window_bounds = array<i64: 32, 32>}, {pipeline_mode = #tpu.pipeline_mode<synchronous>, transform_indices = @transform_4, window_bounds = array<i64: 32, 32>}, {pipeline_mode = #tpu.pipeline_mode<synchronous>, transform_indices = @transform_5, window_bounds = array<i64: 32, 32>}, {pipeline_mode = #tpu.pipeline_mode<synchronous>, transform_indices = @transform_6, window_bounds = array<i64: 32, 32>}, {pipeline_mode = #tpu.pipeline_mode<synchronous>, transform_indices = @transform_7, window_bounds = array<i64: 1, 32>}, {transform_indices = @transform_8, window_bounds = array<i64: 1, 8, 32>}]} {
    %c0 = arith.constant 0 : index
    %c0_0 = arith.constant 0 : index
    %c0_1 = arith.constant 0 : index
    %0 = vector.load %arg1[%c0, %c0_0, %c0_1] : memref<1x8x32xf32, #tpu.memory_space<vmem>>, vector<1x8x32xf32>
    %1 = vector.shape_cast %0 : vector<1x8x32xf32> to vector<8x32xf32>
    %c0_2 = arith.constant 0 : index
    %c0_3 = arith.constant 0 : index
    %c0_4 = arith.constant 0 : index
    %2 = vector.load %arg2[%c0_2, %c0_3, %c0_4] : memref<1x8x32xf32, #tpu.memory_space<vmem>>, vector<1x8x32xf32>
    %3 = vector.shape_cast %2 : vector<1x8x32xf32> to vector<8x32xf32>
    %c0_5 = arith.constant 0 : index
    %c0_6 = arith.constant 0 : index
    %c0_7 = arith.constant 0 : index
    %4 = vector.load %arg3[%c0_5, %c0_6, %c0_7] : memref<1x8x32xf32, #tpu.memory_space<vmem>>, vector<1x8x32xf32>
    %5 = vector.shape_cast %4 : vector<1x8x32xf32> to vector<8x32xf32>
    %c0_8 = arith.constant 0 : index
    %c0_9 = arith.constant 0 : index
    %6 = vector.load %arg4[%c0_8, %c0_9] : memref<32x32xf32, #tpu.memory_space<vmem>>, vector<32x32xf32>
    %cst = arith.constant dense<0.000000e+00> : vector<8x32xf32>
    %7 = tpu.matmul %1, %6, %cst {dimension_numbers = #tpu.dot_dimension_numbers<[1], [0], [0], [1], [0, 0, 1, 1], [], []>} : vector<8x32xf32>, vector<32x32xf32>, vector<8x32xf32> -> vector<8x32xf32>
    %c0_10 = arith.constant 0 : index
    %c0_11 = arith.constant 0 : index
    %8 = vector.load %arg5[%c0_10, %c0_11] : memref<32x32xf32, #tpu.memory_space<vmem>>, vector<32x32xf32>
    %cst_12 = arith.constant dense<0.000000e+00> : vector<8x32xf32>
    %9 = tpu.matmul %3, %8, %cst_12 {dimension_numbers = #tpu.dot_dimension_numbers<[1], [0], [0], [1], [0, 0, 1, 1], [], []>} : vector<8x32xf32>, vector<32x32xf32>, vector<8x32xf32> -> vector<8x32xf32>
    %c0_13 = arith.constant 0 : index
    %c0_14 = arith.constant 0 : index
    %10 = vector.load %arg6[%c0_13, %c0_14] : memref<32x32xf32, #tpu.memory_space<vmem>>, vector<32x32xf32>
    %cst_15 = arith.constant dense<0.000000e+00> : vector<8x32xf32>
    %11 = tpu.matmul %5, %10, %cst_15 {dimension_numbers = #tpu.dot_dimension_numbers<[1], [0], [0], [1], [0, 0, 1, 1], [], []>} : vector<8x32xf32>, vector<32x32xf32>, vector<8x32xf32> -> vector<8x32xf32>
    %cst_16 = arith.constant 0.353553385 : f32
    %12 = vector.broadcast %cst_16 : f32 to vector<8x32xf32>
    %13 = arith.mulf %7, %12 : vector<8x32xf32>
    %14 = vector.extract_strided_slice %13 {offsets = [0, 0], sizes = [8, 8], strides = [1, 1]} : vector<8x32xf32> to vector<8x8xf32>
    %15 = vector.extract_strided_slice %9 {offsets = [0, 0], sizes = [8, 8], strides = [1, 1]} : vector<8x32xf32> to vector<8x8xf32>
    %16 = vector.extract_strided_slice %11 {offsets = [0, 0], sizes = [8, 8], strides = [1, 1]} : vector<8x32xf32> to vector<8x8xf32>
    %cst_17 = arith.constant dense<0.000000e+00> : vector<8x8xf32>
    %17 = tpu.matmul %14, %15, %cst_17 {dimension_numbers = #tpu.dot_dimension_numbers<[1], [1], [0], [0], [0, 0, 1, 0], [], []>} : vector<8x8xf32>, vector<8x8xf32>, vector<8x8xf32> -> vector<8x8xf32>
    %cst_18 = arith.constant dense<0xFF800000> : vector<8xf32>
    %18 = vector.multi_reduction <maximumf>, %17, %cst_18 [1] : vector<8x8xf32> to vector<8xf32>
    %19 = vector.shape_cast %18 : vector<8xf32> to vector<8x1xf32>
    %20 = vector.broadcast %19 : vector<8x1xf32> to vector<8x8xf32>
    %21 = arith.subf %17, %20 : vector<8x8xf32>
    %22 = math.exp %21 : vector<8x8xf32>
    %cst_19 = arith.constant dense<0.000000e+00> : vector<8xf32>
    %23 = vector.multi_reduction <add>, %22, %cst_19 [1] : vector<8x8xf32> to vector<8xf32>
    %24 = vector.shape_cast %23 : vector<8xf32> to vector<8x1xf32>
    %25 = tpu.reciprocal %24 {approx = true} : vector<8x1xf32> -> vector<8x1xf32>
    %26 = vector.broadcast %25 : vector<8x1xf32> to vector<8x8xf32>
    %27 = arith.mulf %22, %26 : vector<8x8xf32>
    %cst_20 = arith.constant dense<0.000000e+00> : vector<8x8xf32>
    %28 = tpu.matmul %27, %16, %cst_20 {dimension_numbers = #tpu.dot_dimension_numbers<[1], [0], [0], [1], [0, 0, 1, 1], [], []>} : vector<8x8xf32>, vector<8x8xf32>, vector<8x8xf32> -> vector<8x8xf32>
    %29 = vector.extract_strided_slice %13 {offsets = [0, 8], sizes = [8, 8], strides = [1, 1]} : vector<8x32xf32> to vector<8x8xf32>
    %30 = vector.extract_strided_slice %9 {offsets = [0, 8], sizes = [8, 8], strides = [1, 1]} : vector<8x32xf32> to vector<8x8xf32>
    %31 = vector.extract_strided_slice %11 {offsets = [0, 8], sizes = [8, 8], strides = [1, 1]} : vector<8x32xf32> to vector<8x8xf32>
    %cst_21 = arith.constant dense<0.000000e+00> : vector<8x8xf32>
    %32 = tpu.matmul %29, %30, %cst_21 {dimension_numbers = #tpu.dot_dimension_numbers<[1], [1], [0], [0], [0, 0, 1, 0], [], []>} : vector<8x8xf32>, vector<8x8xf32>, vector<8x8xf32> -> vector<8x8xf32>
    %cst_22 = arith.constant dense<0xFF800000> : vector<8xf32>
    %33 = vector.multi_reduction <maximumf>, %32, %cst_22 [1] : vector<8x8xf32> to vector<8xf32>
    %34 = vector.shape_cast %33 : vector<8xf32> to vector<8x1xf32>
    %35 = vector.broadcast %34 : vector<8x1xf32> to vector<8x8xf32>
    %36 = arith.subf %32, %35 : vector<8x8xf32>
    %37 = math.exp %36 : vector<8x8xf32>
    %cst_23 = arith.constant dense<0.000000e+00> : vector<8xf32>
    %38 = vector.multi_reduction <add>, %37, %cst_23 [1] : vector<8x8xf32> to vector<8xf32>
    %39 = vector.shape_cast %38 : vector<8xf32> to vector<8x1xf32>
    %40 = tpu.reciprocal %39 {approx = true} : vector<8x1xf32> -> vector<8x1xf32>
    %41 = vector.broadcast %40 : vector<8x1xf32> to vector<8x8xf32>
    %42 = arith.mulf %37, %41 : vector<8x8xf32>
    %cst_24 = arith.constant dense<0.000000e+00> : vector<8x8xf32>
    %43 = tpu.matmul %42, %31, %cst_24 {dimension_numbers = #tpu.dot_dimension_numbers<[1], [0], [0], [1], [0, 0, 1, 1], [], []>} : vector<8x8xf32>, vector<8x8xf32>, vector<8x8xf32> -> vector<8x8xf32>
    %44 = vector.extract_strided_slice %13 {offsets = [0, 16], sizes = [8, 8], strides = [1, 1]} : vector<8x32xf32> to vector<8x8xf32>
    %45 = vector.extract_strided_slice %9 {offsets = [0, 16], sizes = [8, 8], strides = [1, 1]} : vector<8x32xf32> to vector<8x8xf32>
    %46 = vector.extract_strided_slice %11 {offsets = [0, 16], sizes = [8, 8], strides = [1, 1]} : vector<8x32xf32> to vector<8x8xf32>
    %cst_25 = arith.constant dense<0.000000e+00> : vector<8x8xf32>
    %47 = tpu.matmul %44, %45, %cst_25 {dimension_numbers = #tpu.dot_dimension_numbers<[1], [1], [0], [0], [0, 0, 1, 0], [], []>} : vector<8x8xf32>, vector<8x8xf32>, vector<8x8xf32> -> vector<8x8xf32>
    %cst_26 = arith.constant dense<0xFF800000> : vector<8xf32>
    %48 = vector.multi_reduction <maximumf>, %47, %cst_26 [1] : vector<8x8xf32> to vector<8xf32>
    %49 = vector.shape_cast %48 : vector<8xf32> to vector<8x1xf32>
    %50 = vector.broadcast %49 : vector<8x1xf32> to vector<8x8xf32>
    %51 = arith.subf %47, %50 : vector<8x8xf32>
    %52 = math.exp %51 : vector<8x8xf32>
    %cst_27 = arith.constant dense<0.000000e+00> : vector<8xf32>
    %53 = vector.multi_reduction <add>, %52, %cst_27 [1] : vector<8x8xf32> to vector<8xf32>
    %54 = vector.shape_cast %53 : vector<8xf32> to vector<8x1xf32>
    %55 = tpu.reciprocal %54 {approx = true} : vector<8x1xf32> -> vector<8x1xf32>
    %56 = vector.broadcast %55 : vector<8x1xf32> to vector<8x8xf32>
    %57 = arith.mulf %52, %56 : vector<8x8xf32>
    %cst_28 = arith.constant dense<0.000000e+00> : vector<8x8xf32>
    %58 = tpu.matmul %57, %46, %cst_28 {dimension_numbers = #tpu.dot_dimension_numbers<[1], [0], [0], [1], [0, 0, 1, 1], [], []>} : vector<8x8xf32>, vector<8x8xf32>, vector<8x8xf32> -> vector<8x8xf32>
    %59 = vector.extract_strided_slice %13 {offsets = [0, 24], sizes = [8, 8], strides = [1, 1]} : vector<8x32xf32> to vector<8x8xf32>
    %60 = vector.extract_strided_slice %9 {offsets = [0, 24], sizes = [8, 8], strides = [1, 1]} : vector<8x32xf32> to vector<8x8xf32>
    %61 = vector.extract_strided_slice %11 {offsets = [0, 24], sizes = [8, 8], strides = [1, 1]} : vector<8x32xf32> to vector<8x8xf32>
    %cst_29 = arith.constant dense<0.000000e+00> : vector<8x8xf32>
    %62 = tpu.matmul %59, %60, %cst_29 {dimension_numbers = #tpu.dot_dimension_numbers<[1], [1], [0], [0], [0, 0, 1, 0], [], []>} : vector<8x8xf32>, vector<8x8xf32>, vector<8x8xf32> -> vector<8x8xf32>
    %cst_30 = arith.constant dense<0xFF800000> : vector<8xf32>
    %63 = vector.multi_reduction <maximumf>, %62, %cst_30 [1] : vector<8x8xf32> to vector<8xf32>
    %64 = vector.shape_cast %63 : vector<8xf32> to vector<8x1xf32>
    %65 = vector.broadcast %64 : vector<8x1xf32> to vector<8x8xf32>
    %66 = arith.subf %62, %65 : vector<8x8xf32>
    %67 = math.exp %66 : vector<8x8xf32>
    %cst_31 = arith.constant dense<0.000000e+00> : vector<8xf32>
    %68 = vector.multi_reduction <add>, %67, %cst_31 [1] : vector<8x8xf32> to vector<8xf32>
    %69 = vector.shape_cast %68 : vector<8xf32> to vector<8x1xf32>
    %70 = tpu.reciprocal %69 {approx = true} : vector<8x1xf32> -> vector<8x1xf32>
    %71 = vector.broadcast %70 : vector<8x1xf32> to vector<8x8xf32>
    %72 = arith.mulf %67, %71 : vector<8x8xf32>
    %cst_32 = arith.constant dense<0.000000e+00> : vector<8x8xf32>
    %73 = tpu.matmul %72, %61, %cst_32 {dimension_numbers = #tpu.dot_dimension_numbers<[1], [0], [0], [1], [0, 0, 1, 1], [], []>} : vector<8x8xf32>, vector<8x8xf32>, vector<8x8xf32> -> vector<8x8xf32>
    %74 = tpu.concatenate %28, %43, %58, %73 in 1 : vector<8x8xf32>, vector<8x8xf32>, vector<8x8xf32>, vector<8x8xf32> -> vector<8x32xf32>
    %c0_33 = arith.constant 0 : index
    %c0_34 = arith.constant 0 : index
    %75 = vector.load %arg7[%c0_33, %c0_34] : memref<32x32xf32, #tpu.memory_space<vmem>>, vector<32x32xf32>
    %cst_35 = arith.constant dense<0.000000e+00> : vector<8x32xf32>
    %76 = tpu.matmul %74, %75, %cst_35 {dimension_numbers = #tpu.dot_dimension_numbers<[1], [0], [0], [1], [0, 0, 1, 1], [], []>} : vector<8x32xf32>, vector<32x32xf32>, vector<8x32xf32> -> vector<8x32xf32>
    %c0_36 = arith.constant 0 : index
    %c0_37 = arith.constant 0 : index
    %77 = vector.load %arg8[%c0_36, %c0_37] : memref<1x32xf32, #tpu.memory_space<vmem>>, vector<1x32xf32>
    %78 = vector.broadcast %77 : vector<1x32xf32> to vector<8x32xf32>
    %79 = arith.addf %76, %78 : vector<8x32xf32>
    %c0_38 = arith.constant 0 : index
    %c0_39 = arith.constant 0 : index
    %c0_40 = arith.constant 0 : index
    %80 = vector.load %arg9[%c0_38, %c0_39, %c0_40] : memref<1x8x32xf32, #tpu.memory_space<vmem>>, vector<1x8x32xf32>
    %81 = vector.shape_cast %80 : vector<1x8x32xf32> to vector<8x32xf32>
    %82 = vector.shape_cast %79 : vector<8x32xf32> to vector<1x8x32xf32>
    tpu.vector_store %arg9[%c0_38, %c0_39, %c0_40], %82 {strides = array<i32>} : memref<1x8x32xf32, #tpu.memory_space<vmem>>, vector<1x8x32xf32>,
    return
  }
  func.func @transform_0(%arg0: i32) -> (i32, i32, i32) {
    %c0_i32 = arith.constant 0 : i32
    %c0_i32_0 = arith.constant 0 : i32
    %c0_i32_1 = arith.constant 0 : i32
    return %arg0, %c0_i32, %c0_i32_0 : i32, i32, i32
  }
  func.func @transform_1(%arg0: i32) -> (i32, i32, i32) {
    %c0_i32 = arith.constant 0 : i32
    %c0_i32_0 = arith.constant 0 : i32
    %c0_i32_1 = arith.constant 0 : i32
    return %arg0, %c0_i32, %c0_i32_0 : i32, i32, i32
  }
  func.func @transform_2(%arg0: i32) -> (i32, i32, i32) {
    %c0_i32 = arith.constant 0 : i32
    %c0_i32_0 = arith.constant 0 : i32
    %c0_i32_1 = arith.constant 0 : i32
    return %arg0, %c0_i32, %c0_i32_0 : i32, i32, i32
  }
  func.func @transform_3(%arg0: i32) -> (i32, i32) {
    %c0_i32 = arith.constant 0 : i32
    %c0_i32_0 = arith.constant 0 : i32
    %c0_i32_1 = arith.constant 0 : i32
    return %c0_i32, %c0_i32_0 : i32, i32
  }
  func.func @transform_4(%arg0: i32) -> (i32, i32) {
    %c0_i32 = arith.constant 0 : i32
    %c0_i32_0 = arith.constant 0 : i32
    %c0_i32_1 = arith.constant 0 : i32
    return %c0_i32, %c0_i32_0 : i32, i32
  }
  func.func @transform_5(%arg0: i32) -> (i32, i32) {
    %c0_i32 = arith.constant 0 : i32
    %c0_i32_0 = arith.constant 0 : i32
    %c0_i32_1 = arith.constant 0 : i32
    return %c0_i32, %c0_i32_0 : i32, i32
  }
  func.func @transform_6(%arg0: i32) -> (i32, i32) {
    %c0_i32 = arith.constant 0 : i32
    %c0_i32_0 = arith.constant 0 : i32
    %c0_i32_1 = arith.constant 0 : i32
    return %c0_i32, %c0_i32_0 : i32, i32
  }
  func.func @transform_7(%arg0: i32) -> (i32, i32) {
    %c0_i32 = arith.constant 0 : i32
    %c0_i32_0 = arith.constant 0 : i32
    %c0_i32_1 = arith.constant 0 : i32
    return %c0_i32, %c0_i32_0 : i32, i32
  }
  func.func @transform_8(%arg0: i32) -> (i32, i32, i32) {
    %c0_i32 = arith.constant 0 : i32
    %c0_i32_0 = arith.constant 0 : i32
    %c0_i32_1 = arith.constant 0 : i32
    return %arg0, %c0_i32, %c0_i32_0 : i32, i32, i32
  }
}

</mosaic_0001>

<llo_original>
// kernel: tpu_custom_call.1
$region0: #{tpu_custom_call.1}
  #allocation0 [shape = 'u32[]', space=smem, size = 0x4, offset = 0x4, fixed_abs, tag = 'smem constant byte address 0x4 - core index']
  #allocation1 [shape = 'u32[144,128]{1,0:T(1,128)}', space=vmem, size = 0x12000, scoped, tag = 'internal scratch']
  %s0 = inlined_call_operand.hbm [shape: f32[2,8,32], index: 0, kind: input, shape index: {}]
  %s1 = inlined_call_operand.hbm [shape: f32[2,8,32], index: 1, kind: input, shape index: {}]
  %s2 = inlined_call_operand.hbm [shape: f32[2,8,32], index: 2, kind: input, shape index: {}]
  %s3 = inlined_call_operand.hbm [shape: f32[32,32], index: 3, kind: input, shape index: {}]
  %s4 = inlined_call_operand.hbm [shape: f32[32,32], index: 4, kind: input, shape index: {}]
  %s5 = inlined_call_operand.hbm [shape: f32[32,32], index: 5, kind: input, shape index: {}]
  %s6 = inlined_call_operand.hbm [shape: f32[32,32], index: 6, kind: input, shape index: {}]
  %s7 = inlined_call_operand.vmem [shape: f32[1,32], index: 7, kind: input, shape index: {}]
  %s8 = inlined_call_operand.hbm [shape: f32[2,8,32], index: 8, kind: output, shape index: {}]
  %s9 = sld [smem:[#allocation0]]
  $region93: #{tpu_custom_call.1} parent=0
    _
  %s11 = ssub.s32 1, %s9
  %s12 = scalar_select 0, %s11, %s9
  $region1: #{tpu_custom_call.1} parent=0
    #allocation2 [shape = 'u8[8192]{0}', space=vmem, size = 0x2000, scoped, tag = 'input window, operand 0']
    #allocation3 [shape = 's32[2]{0}', space=sflag, size = 0x8, scoped, tag = 'scoped memory for tpu_custom_call.1']
    #allocation4 [shape = 's32[2]{0}', space=sflag, size = 0x8, scoped, tag = 'scoped memory for tpu_custom_call.1']
    #allocation5 [shape = 'u8[8192]{0}', space=vmem, size = 0x2000, scoped, tag = 'input window, operand 1']
    #allocation6 [shape = 's32[2]{0}', space=sflag, size = 0x8, scoped, tag = 'scoped memory for tpu_custom_call.1']
    #allocation7 [shape = 'u8[8192]{0}', space=vmem, size = 0x2000, scoped, tag = 'input window, operand 2']
    #allocation8 [shape = 'u8[16384]{0}', space=vmem, size = 0x4000, scoped, tag = 'input window, operand 3, single buffered']
    #allocation9 [shape = 's32[1]{0}', space=sflag, size = 0x4, scoped, tag = 'scoped memory for tpu_custom_call.1']
    #allocation10 [shape = 'u8[16384]{0}', space=vmem, size = 0x4000, scoped, tag = 'input window, operand 4, single buffered']
    #allocation11 [shape = 'u8[16384]{0}', space=vmem, size = 0x4000, scoped, tag = 'input window, operand 5, single buffered']
    #allocation12 [shape = 's32[1]{0}', space=sflag, size = 0x4, scoped, tag = 'scoped memory for tpu_custom_call.1']
    #allocation13 [shape = 'u8[16384]{0}', space=vmem, size = 0x4000, scoped, tag = 'input window, operand 6, single buffered']
    #allocation14 [shape = 'u8[8192]{0}', space=vmem, size = 0x2000, scoped, tag = 'output window, operand 0']
    %13 = vsyncpa [#allocation3], 0
    %s14 = scalar_lea.sflag [#allocation3], 1
    %15 = vsyncpa %s14, 0
    %16 = vsyncpa [#allocation6], 0
    %s17 = scalar_lea.sflag [#allocation6], 1
    %18 = vsyncpa %s17, 0
    %19 = vsyncpa [#allocation9], 0
    %20 = vsyncpa [#allocation12], 0
    %21 = vsyncpa [#allocation4], 0
    %s22 = scalar_lea.sflag [#allocation4], 1
    %23 = vsyncpa %s22, 0
    loop: start=0, step=1, limit=4
    $region2: #{tpu_custom_call.1} parent=1 // loop_pre_header
      _
    $region3: #{tpu_custom_call.1} parent=1 // loop_header
      %s25 = sphi 0, %s29
      %p26 = scmp.ge.s32.totalorder %s25, 4
      %s35 = sphi 0, %s37
      %s38 = sphi 0, %s35
      %s39 = sphi 0, %s38
      %s55 = sphi 0, %s39
      %s61 = sphi 0, %s63
      %s64 = sphi 0, %s61
      %s65 = sphi 0, %s64
      %s81 = sphi 0, %s65
      %s87 = sphi 0, %s89
      %s90 = sphi 0, %s87
      %s91 = sphi 0, %s90
      %s107 = sphi 0, %s91
      %s111 = sphi 0, %s111
      %s113 = sphi 0, %s111
      %s114 = sphi 0, %s113
      %s128 = sphi 0, %s114
      %s132 = sphi 0, %s132
      %s134 = sphi 0, %s132
      %s135 = sphi 0, %s134
      %s149 = sphi 0, %s135
      %s153 = sphi 0, %s153
      %s155 = sphi 0, %s153
      %s156 = sphi 0, %s155
      %s170 = sphi 0, %s156
      %s174 = sphi 0, %s174
      %s176 = sphi 0, %s174
      %s177 = sphi 0, %s176
      %s191 = sphi 0, %s177
      %s195 = sphi 0, %s195
      %s197 = sphi 0, %s195
      %s198 = sphi 0, %s197
      %s212 = sphi 0, %s198
      %s218 = sphi 0, %s220
      %s221 = sphi 0, %s218
      %s222 = sphi 0, %s221
      %s238 = sphi 0, %s222
    $region4: #{tpu_custom_call.1} parent=1 // loop_header_branch
      %28 = sbr.rel (%p26) target = $region8
    $region5: #{tpu_custom_call.1} parent=1 // loop_body
      %s30 = ssub.s32 %s25, 1
      %s31 = ssub.s32 %s25, 2
      %s32 = sadd.s32 %s25, 1
      %s33 = ssub.s32 %s25, %s32
      %p34 = scmp.eq.s32.totalorder %s33, 0
      %s36 = sadd.s32 %s35, 1
      %s37 = scalar_select %p34, %s35, %s36
      %p40 = pneg %p34
      %p41 = scmp.eq.s32.totalorder %s25, 1
      %p42 = por %p40, %p41
      %p43 = scmp.ne.s32.totalorder %s35, %s38
      %p44 = scmp.eq.s32.totalorder %s25, 0
      %p45 = por %p43, %p44
      %p46 = scmp.ne.s32.totalorder %s35, %s38
      %p47 = scmp.eq.s32.totalorder %s30, 1
      %p48 = por %p46, %p47
      %p49 = scmp.ne.s32.totalorder %s38, %s39
      %p50 = scmp.eq.s32.totalorder %s30, 0
      %p51 = por %p49, %p50
      %p52 = scmp.ne.s32.totalorder %s38, %s39
      %p53 = scmp.eq.s32.totalorder %s31, 1
      %p54 = por %p52, %p53
      %p56 = scmp.ne.s32.totalorder %s39, %s55
      %p57 = scmp.eq.s32.totalorder %s31, 0
      %p58 = por %p56, %p57
      %s59 = ssub.s32 %s25, %s32
      %p60 = scmp.eq.s32.totalorder %s59, 0
      %s62 = sadd.s32 %s61, 1
      %s63 = scalar_select %p60, %s61, %s62
      %p66 = pneg %p60
      %p67 = scmp.eq.s32.totalorder %s25, 1
      %p68 = por %p66, %p67
      %p69 = scmp.ne.s32.totalorder %s61, %s64
      %p70 = scmp.eq.s32.totalorder %s25, 0
      %p71 = por %p69, %p70
      %p72 = scmp.ne.s32.totalorder %s61, %s64
      %p73 = scmp.eq.s32.totalorder %s30, 1
      %p74 = por %p72, %p73
      %p75 = scmp.ne.s32.totalorder %s64, %s65
      %p76 = scmp.eq.s32.totalorder %s30, 0
      %p77 = por %p75, %p76
      %p78 = scmp.ne.s32.totalorder %s64, %s65
      %p79 = scmp.eq.s32.totalorder %s31, 1
      %p80 = por %p78, %p79
      %p82 = scmp.ne.s32.totalorder %s65, %s81
      %p83 = scmp.eq.s32.totalorder %s31, 0
      %p84 = por %p82, %p83
      %s85 = ssub.s32 %s25, %s32
      %p86 = scmp.eq.s32.totalorder %s85, 0
      %s88 = sadd.s32 %s87, 1
      %s89 = scalar_select %p86, %s87, %s88
      %p92 = pneg %p86
      %p93 = scmp.eq.s32.totalorder %s25, 1
      %p94 = por %p92, %p93
      %p95 = scmp.ne.s32.totalorder %s87, %s90
      %p96 = scmp.eq.s32.totalorder %s25, 0
      %p97 = por %p95, %p96
      %p98 = scmp.ne.s32.totalorder %s87, %s90
      %p99 = scmp.eq.s32.totalorder %s30, 1
      %p100 = por %p98, %p99
      %p101 = scmp.ne.s32.totalorder %s90, %s91
      %p102 = scmp.eq.s32.totalorder %s30, 0
      %p103 = por %p101, %p102
      %p104 = scmp.ne.s32.totalorder %s90, %s91
      %p105 = scmp.eq.s32.totalorder %s31, 1
      %p106 = por %p104, %p105
      %p108 = scmp.ne.s32.totalorder %s91, %s107
      %p109 = scmp.eq.s32.totalorder %s31, 0
      %p110 = por %p108, %p109
      %s112 = sadd.s32 %s111, 1
      %p115 = scmp.eq.s32.totalorder %s25, 1
      %p116 = scmp.ne.s32.totalorder %s111, %s113
      %p117 = scmp.eq.s32.totalorder %s25, 0
      %p118 = por %p116, %p117
      %p119 = scmp.ne.s32.totalorder %s111, %s113
      %p120 = scmp.eq.s32.totalorder %s30, 1
      %p121 = por %p119, %p120
      %p122 = scmp.ne.s32.totalorder %s113, %s114
      %p123 = scmp.eq.s32.totalorder %s30, 0
      %p124 = por %p122, %p123
      %p125 = scmp.ne.s32.totalorder %s113, %s114
      %p126 = scmp.eq.s32.totalorder %s31, 1
      %p127 = por %p125, %p126
      %p129 = scmp.ne.s32.totalorder %s114, %s128
      %p130 = scmp.eq.s32.totalorder %s31, 0
      %p131 = por %p129, %p130
      %s133 = sadd.s32 %s132, 1
      %p136 = scmp.eq.s32.totalorder %s25, 1
      %p137 = scmp.ne.s32.totalorder %s132, %s134
      %p138 = scmp.eq.s32.totalorder %s25, 0
      %p139 = por %p137, %p138
      %p140 = scmp.ne.s32.totalorder %s132, %s134
      %p141 = scmp.eq.s32.totalorder %s30, 1
      %p142 = por %p140, %p141
      %p143 = scmp.ne.s32.totalorder %s134, %s135
      %p144 = scmp.eq.s32.totalorder %s30, 0
      %p145 = por %p143, %p144
      %p146 = scmp.ne.s32.totalorder %s134, %s135
      %p147 = scmp.eq.s32.totalorder %s31, 1
      %p148 = por %p146, %p147
      %p150 = scmp.ne.s32.totalorder %s135, %s149
      %p151 = scmp.eq.s32.totalorder %s31, 0
      %p152 = por %p150, %p151
      %s154 = sadd.s32 %s153, 1
      %p157 = scmp.eq.s32.totalorder %s25, 1
      %p158 = scmp.ne.s32.totalorder %s153, %s155
      %p159 = scmp.eq.s32.totalorder %s25, 0
      %p160 = por %p158, %p159
      %p161 = scmp.ne.s32.totalorder %s153, %s155
      %p162 = scmp.eq.s32.totalorder %s30, 1
      %p163 = por %p161, %p162
      %p164 = scmp.ne.s32.totalorder %s155, %s156
      %p165 = scmp.eq.s32.totalorder %s30, 0
      %p166 = por %p164, %p165
      %p167 = scmp.ne.s32.totalorder %s155, %s156
      %p168 = scmp.eq.s32.totalorder %s31, 1
      %p169 = por %p167, %p168
      %p171 = scmp.ne.s32.totalorder %s156, %s170
      %p172 = scmp.eq.s32.totalorder %s31, 0
      %p173 = por %p171, %p172
      %s175 = sadd.s32 %s174, 1
      %p178 = scmp.eq.s32.totalorder %s25, 1
      %p179 = scmp.ne.s32.totalorder %s174, %s176
      %p180 = scmp.eq.s32.totalorder %s25, 0
      %p181 = por %p179, %p180
      %p182 = scmp.ne.s32.totalorder %s174, %s176
      %p183 = scmp.eq.s32.totalorder %s30, 1
      %p184 = por %p182, %p183
      %p185 = scmp.ne.s32.totalorder %s176, %s177
      %p186 = scmp.eq.s32.totalorder %s30, 0
      %p187 = por %p185, %p186
      %p188 = scmp.ne.s32.totalorder %s176, %s177
      %p189 = scmp.eq.s32.totalorder %s31, 1
      %p190 = por %p188, %p189
      %p192 = scmp.ne.s32.totalorder %s177, %s191
      %p193 = scmp.eq.s32.totalorder %s31, 0
      %p194 = por %p192, %p193
      %s196 = sadd.s32 %s195, 1
      %p199 = scmp.eq.s32.totalorder %s25, 1
      %p200 = scmp.ne.s32.totalorder %s195, %s197
      %p201 = scmp.eq.s32.totalorder %s25, 0
      %p202 = por %p200, %p201
      %p203 = scmp.ne.s32.totalorder %s195, %s197
      %p204 = scmp.eq.s32.totalorder %s30, 1
      %p205 = por %p203, %p204
      %p206 = scmp.ne.s32.totalorder %s197, %s198
      %p207 = scmp.eq.s32.totalorder %s30, 0
      %p208 = por %p206, %p207
      %p209 = scmp.ne.s32.totalorder %s197, %s198
      %p210 = scmp.eq.s32.totalorder %s31, 1
      %p211 = por %p209, %p210
      %p213 = scmp.ne.s32.totalorder %s198, %s212
      %p214 = scmp.eq.s32.totalorder %s31, 0
      %p215 = por %p213, %p214
      %s216 = ssub.s32 %s25, %s32
      %p217 = scmp.eq.s32.totalorder %s216, 0
      %s219 = sadd.s32 %s218, 1
      %s220 = scalar_select %p217, %s218, %s219
      %p223 = pneg %p217
      %p224 = scmp.eq.s32.totalorder %s25, 1
      %p225 = por %p223, %p224
      %p226 = scmp.ne.s32.totalorder %s218, %s221
      %p227 = scmp.eq.s32.totalorder %s25, 0
      %p228 = por %p226, %p227
      %p229 = scmp.ne.s32.totalorder %s218, %s221
      %p230 = scmp.eq.s32.totalorder %s30, 1
      %p231 = por %p229, %p230
      %p232 = scmp.ne.s32.totalorder %s221, %s222
      %p233 = scmp.eq.s32.totalorder %s30, 0
      %p234 = por %p232, %p233
      %p235 = scmp.ne.s32.totalorder %s221, %s222
      %p236 = scmp.eq.s32.totalorder %s31, 1
      %p237 = por %p235, %p236
      %p239 = scmp.ne.s32.totalorder %s222, %s238
      %p240 = scmp.eq.s32.totalorder %s31, 0
      %p241 = por %p239, %p240
      %p242 = scmp.le.s32.totalorder 1, %s25
      %p243 = scmp.lt.s32.totalorder %s25, 3
      %p244 = pnand %p242, %p243
      %p245 = pneg %p244
      // Predicated region
      $region9: #{tpu_custom_call.1} parent=5 // pred_check
        _
      $region10: #{tpu_custom_call.1} parent=5 // pred_check_branch
        %247 = sbr.rel (%p244) target = $region12
      $region11: #{tpu_custom_call.1} parent=5 // pred_region
        %s248 = ssub.s32 %s25, 1
        // Predicated region
        $region13: #{tpu_custom_call.1} parent=11 // pred_check
          %p249 = pneg %p124
        $region14: #{tpu_custom_call.1} parent=11 // pred_check_branch
          %251 = sbr.rel (%p249) target = $region16
        $region15: #{tpu_custom_call.1} parent=11 // pred_region
          %s253 = ssub.s32 512, 512
          %254 = vsyncadd [#allocation9], %s253
          %s255 = sshll.u32 [#allocation8], 4
          %s256 = int_to_ptr.vmem [resolvable:$true] %s255
          %261 = dma.hbm_to_vmem [thread:$0]  %s3, 512, %s256, [#allocation9], 128, 128, 8
        $region16: #{tpu_custom_call.1} parent=11 // pred_fallthru
          _
        // Predicated region
        $region17: #{tpu_custom_call.1} parent=11 // pred_check
          %p262 = pneg %p145
        $region18: #{tpu_custom_call.1} parent=11 // pred_check_branch
          %264 = sbr.rel (%p262) target = $region20
        $region19: #{tpu_custom_call.1} parent=11 // pred_region
          %s266 = ssub.s32 512, 512
          %267 = vsyncadd [#allocation9], %s266
          %s268 = sshll.u32 [#allocation10], 4
          %s269 = int_to_ptr.vmem [resolvable:$true] %s268
          %274 = dma.hbm_to_vmem [thread:$0]  %s4, 512, %s269, [#allocation9], 128, 128, 8
        $region20: #{tpu_custom_call.1} parent=11 // pred_fallthru
          _
        // Predicated region
        $region21: #{tpu_custom_call.1} parent=11 // pred_check
          %p275 = pneg %p166
        $region22: #{tpu_custom_call.1} parent=11 // pred_check_branch
          %277 = sbr.rel (%p275) target = $region24
        $region23: #{tpu_custom_call.1} parent=11 // pred_region
          %s279 = ssub.s32 512, 512
          %280 = vsyncadd [#allocation12], %s279
          %s281 = sshll.u32 [#allocation11], 4
          %s282 = int_to_ptr.vmem [resolvable:$true] %s281
          %287 = dma.hbm_to_vmem [thread:$0]  %s5, 512, %s282, [#allocation12], 128, 128, 8
        $region24: #{tpu_custom_call.1} parent=11 // pred_fallthru
          _
        // Predicated region
        $region25: #{tpu_custom_call.1} parent=11 // pred_check
          %p288 = pneg %p187
        $region26: #{tpu_custom_call.1} parent=11 // pred_check_branch
          %290 = sbr.rel (%p288) target = $region28
        $region27: #{tpu_custom_call.1} parent=11 // pred_region
          %s292 = ssub.s32 512, 512
          %293 = vsyncadd [#allocation12], %s292
          %s294 = sshll.u32 [#allocation13], 4
          %s295 = int_to_ptr.vmem [resolvable:$true] %s294
          %300 = dma.hbm_to_vmem [thread:$0]  %s6, 512, %s295, [#allocation12], 128, 128, 8
        $region28: #{tpu_custom_call.1} parent=11 // pred_fallthru
          _
        // Predicated region
        $region29: #{tpu_custom_call.1} parent=11 // pred_check
          %p301 = pneg %p208
        $region30: #{tpu_custom_call.1} parent=11 // pred_check_branch
          %303 = sbr.rel (%p301) target = $region32
        $region31: #{tpu_custom_call.1} parent=11 // pred_region
          _
        $region32: #{tpu_custom_call.1} parent=11 // pred_fallthru
          _
      $region12: #{tpu_custom_call.1} parent=5 // pred_fallthru
        _
      %p304 = scmp.lt.s32.totalorder %s25, 2
      // Predicated region
      $region33: #{tpu_custom_call.1} parent=5 // pred_check
        %p305 = pneg %p304
      $region34: #{tpu_custom_call.1} parent=5 // pred_check_branch
        %307 = sbr.rel (%p305) target = $region36
      $region35: #{tpu_custom_call.1} parent=5 // pred_region
        // Predicated region
        $region37: #{tpu_custom_call.1} parent=35 // pred_check
          %p308 = pneg %p45
        $region38: #{tpu_custom_call.1} parent=35 // pred_check_branch
          %310 = sbr.rel (%p308) target = $region40
        $region39: #{tpu_custom_call.1} parent=35 // pred_region
          %s311 = sand.u32 %s35, 1
          %s312 = scalar_lea.sflag [#allocation3], %s311
          %s313 = sand.u32 %s35, 1
          %s314 = smul.addr %s313, 8
          %s315 = scalar_lea.vmem [#allocation2], %s314
          %s317 = ssub.s32 128, 128
          %318 = vsyncadd %s312, %s317
          %s319 = smul.addr %s25, 128
          %s320 = scalar_lea.hbm %s0, %s319
          %s322 = sshll.u32 %s315, 4
          %s323 = int_to_ptr.vmem [resolvable:$true] %s322
          %325 = dma.hbm_to_vmem [thread:$0]  %s320, 128, %s323, %s312
        $region40: #{tpu_custom_call.1} parent=35 // pred_fallthru
          _
        // Predicated region
        $region41: #{tpu_custom_call.1} parent=35 // pred_check
          %p326 = pneg %p71
        $region42: #{tpu_custom_call.1} parent=35 // pred_check_branch
          %328 = sbr.rel (%p326) target = $region44
        $region43: #{tpu_custom_call.1} parent=35 // pred_region
          %s329 = sand.u32 %s25, 1
          %s330 = scalar_lea.sflag [#allocation6], %s329
          %s331 = sand.u32 %s61, 1
          %s332 = smul.addr %s331, 8
          %s333 = scalar_lea.vmem [#allocation5], %s332
          %s335 = ssub.s32 128, 128
          %336 = vsyncadd %s330, %s335
          %s337 = smul.addr %s25, 128
          %s338 = scalar_lea.hbm %s1, %s337
          %s340 = sshll.u32 %s333, 4
          %s341 = int_to_ptr.vmem [resolvable:$true] %s340
          %343 = dma.hbm_to_vmem [thread:$0]  %s338, 128, %s341, %s330
        $region44: #{tpu_custom_call.1} parent=35 // pred_fallthru
          _
        // Predicated region
        $region45: #{tpu_custom_call.1} parent=35 // pred_check
          %p344 = pneg %p97
        $region46: #{tpu_custom_call.1} parent=35 // pred_check_branch
          %346 = sbr.rel (%p344) target = $region48
        $region47: #{tpu_custom_call.1} parent=35 // pred_region
          %s347 = sand.u32 %s25, 1
          %s348 = scalar_lea.sflag [#allocation6], %s347
          %s349 = sand.u32 %s87, 1
          %s350 = smul.addr %s349, 8
          %s351 = scalar_lea.vmem [#allocation7], %s350
          %s353 = ssub.s32 128, 128
          %354 = vsyncadd %s348, %s353
          %s355 = smul.addr %s25, 128
          %s356 = scalar_lea.hbm %s2, %s355
          %s358 = sshll.u32 %s351, 4
          %s359 = int_to_ptr.vmem [resolvable:$true] %s358
          %361 = dma.hbm_to_vmem [thread:$0]  %s356, 128, %s359, %s348
        $region48: #{tpu_custom_call.1} parent=35 // pred_fallthru
          _
      $region36: #{tpu_custom_call.1} parent=5 // pred_fallthru
        _
      %p362 = scmp.le.s32.totalorder 1, %s25
      %p363 = scmp.lt.s32.totalorder %s25, 3
      %p364 = pnand %p362, %p363
      %p365 = pneg %p364
      // Predicated region
      $region49: #{tpu_custom_call.1} parent=5 // pred_check
        _
      $region50: #{tpu_custom_call.1} parent=5 // pred_check_branch
        %367 = sbr.rel (%p364) target = $region52
      $region51: #{tpu_custom_call.1} parent=5 // pred_region
        %s368 = ssub.s32 %s25, 1
        %s369 = sand.u32 %s38, 1
        %s370 = scalar_lea.sflag [#allocation3], %s369
        %s371 = sand.u32 %s38, 1
        %s372 = smul.addr %s371, 8
        %s373 = scalar_lea.vmem [#allocation2], %s372
        // Predicated region
        $region53: #{tpu_custom_call.1} parent=51 // pred_check
          %p374 = pneg %p51
        $region54: #{tpu_custom_call.1} parent=51 // pred_check_branch
          %376 = sbr.rel (%p374) target = $region56
        $region55: #{tpu_custom_call.1} parent=51 // pred_region
          %377 = dma.done %s370, 128
        $region56: #{tpu_custom_call.1} parent=51 // pred_fallthru
          _
        %s378 = sand.u32 %s30, 1
        %s379 = scalar_lea.sflag [#allocation6], %s378
        %s380 = sand.u32 %s64, 1
        %s381 = smul.addr %s380, 8
        %s382 = scalar_lea.vmem [#allocation5], %s381
        // Predicated region
        $region57: #{tpu_custom_call.1} parent=51 // pred_check
          %p383 = pneg %p77
        $region58: #{tpu_custom_call.1} parent=51 // pred_check_branch
          %385 = sbr.rel (%p383) target = $region60
        $region59: #{tpu_custom_call.1} parent=51 // pred_region
          %386 = dma.done %s379, 128
        $region60: #{tpu_custom_call.1} parent=51 // pred_fallthru
          _
        %s387 = sand.u32 %s30, 1
        %s388 = scalar_lea.sflag [#allocation6], %s387
        %s389 = sand.u32 %s90, 1
        %s390 = smul.addr %s389, 8
        %s391 = scalar_lea.vmem [#allocation7], %s390
        // Predicated region
        $region61: #{tpu_custom_call.1} parent=51 // pred_check
          %p392 = pneg %p103
        $region62: #{tpu_custom_call.1} parent=51 // pred_check_branch
          %394 = sbr.rel (%p392) target = $region64
        $region63: #{tpu_custom_call.1} parent=51 // pred_region
          %395 = dma.done %s388, 128
        $region64: #{tpu_custom_call.1} parent=51 // pred_fallthru
          _
        // Predicated region
        $region65: #{tpu_custom_call.1} parent=51 // pred_check
          %p396 = pneg %p124
        $region66: #{tpu_custom_call.1} parent=51 // pred_check_branch
          %398 = sbr.rel (%p396) target = $region68
        $region67: #{tpu_custom_call.1} parent=51 // pred_region
          %399 = dma.done [#allocation9], 512
        $region68: #{tpu_custom_call.1} parent=51 // pred_fallthru
          _
        // Predicated region
        $region69: #{tpu_custom_call.1} parent=51 // pred_check
          %p400 = pneg %p145
        $region70: #{tpu_custom_call.1} parent=51 // pred_check_branch
          %402 = sbr.rel (%p400) target = $region72
        $region71: #{tpu_custom_call.1} parent=51 // pred_region
          %403 = dma.done [#allocation9], 512
        $region72: #{tpu_custom_call.1} parent=51 // pred_fallthru
          _
        // Predicated region
        $region73: #{tpu_custom_call.1} parent=51 // pred_check
          %p404 = pneg %p166
        $region74: #{tpu_custom_call.1} parent=51 // pred_check_branch
          %406 = sbr.rel (%p404) target = $region76
        $region75: #{tpu_custom_call.1} parent=51 // pred_region
          %407 = dma.done [#allocation12], 512
        $region76: #{tpu_custom_call.1} parent=51 // pred_fallthru
          _
        // Predicated region
        $region77: #{tpu_custom_call.1} parent=51 // pred_check
          %p408 = pneg %p187
        $region78: #{tpu_custom_call.1} parent=51 // pred_check_branch
          %410 = sbr.rel (%p408) target = $region80
        $region79: #{tpu_custom_call.1} parent=51 // pred_region
          %411 = dma.done [#allocation12], 512
        $region80: #{tpu_custom_call.1} parent=51 // pred_fallthru
          _
        %s412 = sand.u32 %s38, 1
        %s413 = scalar_lea.sflag [#allocation3], %s412
        %s414 = sand.u32 %s38, 1
        %s415 = smul.addr %s414, 8
        %s416 = scalar_lea.vmem [#allocation2], %s415
        %p417 = pneg %p51
        %p418 = pneg %p48
        %s419 = sand.u32 %s30, 1
        %s420 = scalar_lea.sflag [#allocation6], %s419
        %s421 = sand.u32 %s64, 1
        %s422 = smul.addr %s421, 8
        %s423 = scalar_lea.vmem [#allocation5], %s422
        %p424 = pneg %p77
        %p425 = pneg %p74
        %s426 = sand.u32 %s30, 1
        %s427 = scalar_lea.sflag [#allocation6], %s426
        %s428 = sand.u32 %s90, 1
        %s429 = smul.addr %s428, 8
        %s430 = scalar_lea.vmem [#allocation7], %s429
        %p431 = pneg %p103
        %p432 = pneg %p100
        %p433 = pneg %p124
        %p434 = pneg %p121
        %p435 = pneg %p145
        %p436 = pneg %p142
        %p437 = pneg %p166
        %p438 = pneg %p163
        %p439 = pneg %p187
        %p440 = pneg %p184
        %p441 = pneg %p208
        %p442 = pneg %p205
        %p443 = pneg %p234
        %p444 = pneg %p231
        %s445 = sand.u32 %s221, 1
        %s446 = scalar_lea.sflag [#allocation4], %s445
        %s447 = sand.u32 %s221, 1
        %s448 = smul.addr %s447, 8
        %s449 = scalar_lea.vmem [#allocation14], %s448
        %v450 = vld [vmem:[%s373] sm:$0xff]
        %v451 = vld [vmem:[%s382] sm:$0xff]
        %v452 = vld [vmem:[%s391] sm:$0xff]
        %v453 = vld [vmem:[#allocation8] sm:$0xff]
        %v454 = vld [vmem:[#allocation8 + $0x8] sm:$0xff]
        %v455 = vld [vmem:[#allocation8 + $0x10] sm:$0xff]
        %v456 = vld [vmem:[#allocation8 + $0x18] sm:$0xff]
        %vm457 = vcmask 261120
        %v459 = vsel %vm457, %v450, 0
        %461 = vmatprep.subr.mxu0 0.0
        %462 = vmatpush1.msra.mxu0 0.0
        %463 = vmatprep.subr.mxu0 0.0
        %464 = vmatpush1.msra.mxu0 0.0
        %465 = vmatprep.subr.mxu0 0.0
        %466 = vmatpush1.msra.mxu0 0.0
        %467 = vmatprep.subr.mxu0 0.0
        %468 = vmatpush1.msra.mxu0 0.0
        %469 = vmatprep.subr.mxu0 0.0
        %470 = vmatpush1.msra.mxu0 0.0
        %471 = vmatprep.subr.mxu0 0.0
        %472 = vmatpush1.msra.mxu0 0.0
        %473 = vmatprep.subr.mxu0 0.0
        %474 = vmatpush1.msra.mxu0 0.0
        %475 = vmatprep.subr.mxu0 0.0
        %476 = vmatpush1.msra.mxu0 0.0
        %477 = vmatprep.subr.mxu0 0.0
        %478 = vmatpush1.msra.mxu0 0.0
        %479 = vmatprep.subr.mxu0 0.0
        %480 = vmatpush1.msra.mxu0 0.0
        %481 = vmatprep.subr.mxu0 0.0
        %482 = vmatpush1.msra.mxu0 0.0
        %483 = vmatprep.subr.mxu0 0.0
        %484 = vmatpush1.msra.mxu0 0.0
        %485 = vmatprep.subr.mxu0 0.0
        %486 = vmatpush1.msra.mxu0 %v456
        %487 = vmatprep.subr.mxu0 0.0
        %488 = vmatpush1.msra.mxu0 %v455
        %489 = vmatprep.subr.mxu0 0.0
        %490 = vmatpush1.msra.mxu0 %v454
        %491 = vmatprep.subr.mxu0 0.0
        %492 = vmatpush1.msra.mxu0 %v453
        %493 = vmatprep.subr.mxu0 0.0
        %494 = vmatpush2.msra.mxu0 0.0
        %495 = vmatprep.subr.mxu0 0.0
        %496 = vmatpush2.msra.mxu0 0.0
        %497 = vmatprep.subr.mxu0 0.0
        %498 = vmatpush2.msra.mxu0 0.0
        %499 = vmatprep.subr.mxu0 0.0
        %500 = vmatpush2.msra.mxu0 0.0
        %501 = vmatprep.subr.mxu0 0.0
        %502 = vmatpush2.msra.mxu0 0.0
        %503 = vmatprep.subr.mxu0 0.0
        %504 = vmatpush2.msra.mxu0 0.0
        %505 = vmatprep.subr.mxu0 0.0
        %506 = vmatpush2.msra.mxu0 0.0
        %507 = vmatprep.subr.mxu0 0.0
        %508 = vmatpush2.msra.mxu0 0.0
        %509 = vmatprep.subr.mxu0 0.0
        %510 = vmatpush2.msra.mxu0 0.0
        %511 = vmatprep.subr.mxu0 0.0
        %512 = vmatpush2.msra.mxu0 0.0
        %513 = vmatprep.subr.mxu0 0.0
        %514 = vmatpush2.msra.mxu0 0.0
        %515 = vmatprep.subr.mxu0 0.0
        %516 = vmatpush2.msra.mxu0 0.0
        %517 = vmatprep.subr.mxu0 0.0
        %518 = vmatpush2.msra.mxu0 0.0
        %519 = vmatprep.subr.mxu0 0.0
        %520 = vmatpush2.msra.mxu0 0.0
        %521 = vmatprep.subr.mxu0 0.0
        %522 = vmatpush2.msra.mxu0 0.0
        %523 = vmatprep.subr.mxu0 0.0
        %524 = vmatpush2.msra.mxu0 0.0
        %525 = vmatprep.mubr.f32.mxu0 0.0
        %526 = vmatmul.mubr.f32.gmra.mxu0 %v459
        %v527 = vpop.f32.mrf.mxu0
        %v528 = vadd.f32 0.0, %v527
        %v529 = vpop.f32.mrf.mxu0
        %530 = vdwg.mxu0
        %v531 = vld [vmem:[#allocation10] sm:$0xff]
        %v532 = vld [vmem:[#allocation10 + $0x8] sm:$0xff]
        %v533 = vld [vmem:[#allocation10 + $0x10] sm:$0xff]
        %v534 = vld [vmem:[#allocation10 + $0x18] sm:$0xff]
        %v536 = vsel %vm457, %v451, 0
        %538 = vmatprep.subr.mxu0 0.0
        %539 = vmatpush1.msra.mxu0 0.0
        %540 = vmatprep.subr.mxu0 0.0
        %541 = vmatpush1.msra.mxu0 0.0
        %542 = vmatprep.subr.mxu0 0.0
        %543 = vmatpush1.msra.mxu0 0.0
        %544 = vmatprep.subr.mxu0 0.0
        %545 = vmatpush1.msra.mxu0 0.0
        %546 = vmatprep.subr.mxu0 0.0
        %547 = vmatpush1.msra.mxu0 0.0
        %548 = vmatprep.subr.mxu0 0.0
        %549 = vmatpush1.msra.mxu0 0.0
        %550 = vmatprep.subr.mxu0 0.0
        %551 = vmatpush1.msra.mxu0 0.0
        %552 = vmatprep.subr.mxu0 0.0
        %553 = vmatpush1.msra.mxu0 0.0
        %554 = vmatprep.subr.mxu0 0.0
        %555 = vmatpush1.msra.mxu0 0.0
        %556 = vmatprep.subr.mxu0 0.0
        %557 = vmatpush1.msra.mxu0 0.0
        %558 = vmatprep.subr.mxu0 0.0
        %559 = vmatpush1.msra.mxu0 0.0
        %560 = vmatprep.subr.mxu0 0.0
        %561 = vmatpush1.msra.mxu0 0.0
        %562 = vmatprep.subr.mxu0 0.0
        %563 = vmatpush1.msra.mxu0 %v534
        %564 = vmatprep.subr.mxu0 0.0
        %565 = vmatpush1.msra.mxu0 %v533
        %566 = vmatprep.subr.mxu0 0.0
        %567 = vmatpush1.msra.mxu0 %v532
        %568 = vmatprep.subr.mxu0 0.0
        %569 = vmatpush1.msra.mxu0 %v531
        %570 = vmatprep.subr.mxu0 0.0
        %571 = vmatpush2.msra.mxu0 0.0
        %572 = vmatprep.subr.mxu0 0.0
        %573 = vmatpush2.msra.mxu0 0.0
        %574 = vmatprep.subr.mxu0 0.0
        %575 = vmatpush2.msra.mxu0 0.0
        %576 = vmatprep.subr.mxu0 0.0
        %577 = vmatpush2.msra.mxu0 0.0
        %578 = vmatprep.subr.mxu0 0.0
        %579 = vmatpush2.msra.mxu0 0.0
        %580 = vmatprep.subr.mxu0 0.0
        %581 = vmatpush2.msra.mxu0 0.0
        %582 = vmatprep.subr.mxu0 0.0
        %583 = vmatpush2.msra.mxu0 0.0
        %584 = vmatprep.subr.mxu0 0.0
        %585 = vmatpush2.msra.mxu0 0.0
        %586 = vmatprep.subr.mxu0 0.0
        %587 = vmatpush2.msra.mxu0 0.0
        %588 = vmatprep.subr.mxu0 0.0
        %589 = vmatpush2.msra.mxu0 0.0
        %590 = vmatprep.subr.mxu0 0.0
        %591 = vmatpush2.msra.mxu0 0.0
        %592 = vmatprep.subr.mxu0 0.0
        %593 = vmatpush2.msra.mxu0 0.0
        %594 = vmatprep.subr.mxu0 0.0
        %595 = vmatpush2.msra.mxu0 0.0
        %596 = vmatprep.subr.mxu0 0.0
        %597 = vmatpush2.msra.mxu0 0.0
        %598 = vmatprep.subr.mxu0 0.0
        %599 = vmatpush2.msra.mxu0 0.0
        %600 = vmatprep.subr.mxu0 0.0
        %601 = vmatpush2.msra.mxu0 0.0
        %602 = vmatprep.mubr.f32.mxu0 0.0
        %603 = vmatmul.mubr.f32.gmra.mxu0 %v536
        %v604 = vpop.f32.mrf.mxu0
        %v605 = vadd.f32 0.0, %v604
        %v606 = vpop.f32.mrf.mxu0
        %607 = vdwg.mxu0
        %v608 = vld [vmem:[#allocation11] sm:$0xff]
        %v609 = vld [vmem:[#allocation11 + $0x8] sm:$0xff]
        %v610 = vld [vmem:[#allocation11 + $0x10] sm:$0xff]
        %v611 = vld [vmem:[#allocation11 + $0x18] sm:$0xff]
        %v613 = vsel %vm457, %v452, 0
        %615 = vmatprep.subr.mxu0 0.0
        %616 = vmatpush1.msra.mxu0 0.0
        %617 = vmatprep.subr.mxu0 0.0
        %618 = vmatpush1.msra.mxu0 0.0
        %619 = vmatprep.subr.mxu0 0.0
        %620 = vmatpush1.msra.mxu0 0.0
        %621 = vmatprep.subr.mxu0 0.0
        %622 = vmatpush1.msra.mxu0 0.0
        %623 = vmatprep.subr.mxu0 0.0
        %624 = vmatpush1.msra.mxu0 0.0
        %625 = vmatprep.subr.mxu0 0.0
        %626 = vmatpush1.msra.mxu0 0.0
        %627 = vmatprep.subr.mxu0 0.0
        %628 = vmatpush1.msra.mxu0 0.0
        %629 = vmatprep.subr.mxu0 0.0
        %630 = vmatpush1.msra.mxu0 0.0
        %631 = vmatprep.subr.mxu0 0.0
        %632 = vmatpush1.msra.mxu0 0.0
        %633 = vmatprep.subr.mxu0 0.0
        %634 = vmatpush1.msra.mxu0 0.0
        %635 = vmatprep.subr.mxu0 0.0
        %636 = vmatpush1.msra.mxu0 0.0
        %637 = vmatprep.subr.mxu0 0.0
        %638 = vmatpush1.msra.mxu0 0.0
        %639 = vmatprep.subr.mxu0 0.0
        %640 = vmatpush1.msra.mxu0 %v611
        %641 = vmatprep.subr.mxu0 0.0
        %642 = vmatpush1.msra.mxu0 %v610
        %643 = vmatprep.subr.mxu0 0.0
        %644 = vmatpush1.msra.mxu0 %v609
        %645 = vmatprep.subr.mxu0 0.0
        %646 = vmatpush1.msra.mxu0 %v608
        %647 = vmatprep.subr.mxu0 0.0
        %648 = vmatpush2.msra.mxu0 0.0
        %649 = vmatprep.subr.mxu0 0.0
        %650 = vmatpush2.msra.mxu0 0.0
        %651 = vmatprep.subr.mxu0 0.0
        %652 = vmatpush2.msra.mxu0 0.0
        %653 = vmatprep.subr.mxu0 0.0
        %654 = vmatpush2.msra.mxu0 0.0
        %655 = vmatprep.subr.mxu0 0.0
        %656 = vmatpush2.msra.mxu0 0.0
        %657 = vmatprep.subr.mxu0 0.0
        %658 = vmatpush2.msra.mxu0 0.0
        %659 = vmatprep.subr.mxu0 0.0
        %660 = vmatpush2.msra.mxu0 0.0
        %661 = vmatprep.subr.mxu0 0.0
        %662 = vmatpush2.msra.mxu0 0.0
        %663 = vmatprep.subr.mxu0 0.0
        %664 = vmatpush2.msra.mxu0 0.0
        %665 = vmatprep.subr.mxu0 0.0
        %666 = vmatpush2.msra.mxu0 0.0
        %667 = vmatprep.subr.mxu0 0.0
        %668 = vmatpush2.msra.mxu0 0.0
        %669 = vmatprep.subr.mxu0 0.0
        %670 = vmatpush2.msra.mxu0 0.0
        %671 = vmatprep.subr.mxu0 0.0
        %672 = vmatpush2.msra.mxu0 0.0
        %673 = vmatprep.subr.mxu0 0.0
        %674 = vmatpush2.msra.mxu0 0.0
        %675 = vmatprep.subr.mxu0 0.0
        %676 = vmatpush2.msra.mxu0 0.0
        %677 = vmatprep.subr.mxu0 0.0
        %678 = vmatpush2.msra.mxu0 0.0
        %679 = vmatprep.mubr.f32.mxu0 0.0
        %680 = vmatmul.mubr.f32.gmra.mxu0 %v613
        %v681 = vpop.f32.mrf.mxu0
        %v682 = vadd.f32 0.0, %v681
        %v683 = vpop.f32.mrf.mxu0
        %684 = vdwg.mxu0
        %v685 = vmul.f32 %v528, 0.35355338
        %vm686 = vcmask 64512
        %v688 = vsel %vm686, %v685, 0
        %v691 = vsel %vm686, %v605, 0
        %693 = vmatprep.subr.mxu0 0.0
        %694 = vmatpush1.xpose.msra.mxu0 0.0
        %695 = vmatprep.subr.mxu0 0.0
        %696 = vmatpush1.xpose.msra.mxu0 0.0
        %697 = vmatprep.subr.mxu0 0.0
        %698 = vmatpush1.xpose.msra.mxu0 0.0
        %699 = vmatprep.subr.mxu0 0.0
        %700 = vmatpush1.xpose.msra.mxu0 0.0
        %701 = vmatprep.subr.mxu0 0.0
        %702 = vmatpush1.xpose.msra.mxu0 0.0
        %703 = vmatprep.subr.mxu0 0.0
        %704 = vmatpush1.xpose.msra.mxu0 0.0
        %705 = vmatprep.subr.mxu0 0.0
        %706 = vmatpush1.xpose.msra.mxu0 0.0
        %707 = vmatprep.subr.mxu0 0.0
        %708 = vmatpush1.xpose.msra.mxu0 0.0
        %709 = vmatprep.subr.mxu0 0.0
        %710 = vmatpush1.xpose.msra.mxu0 0.0
        %711 = vmatprep.subr.mxu0 0.0
        %712 = vmatpush1.xpose.msra.mxu0 0.0
        %713 = vmatprep.subr.mxu0 0.0
        %714 = vmatpush1.xpose.msra.mxu0 0.0
        %715 = vmatprep.subr.mxu0 0.0
        %716 = vmatpush1.xpose.msra.mxu0 0.0
        %717 = vmatprep.subr.mxu0 0.0
        %718 = vmatpush1.xpose.msra.mxu0 0.0
        %719 = vmatprep.subr.mxu0 0.0
        %720 = vmatpush1.xpose.msra.mxu0 0.0
        %721 = vmatprep.subr.mxu0 0.0
        %722 = vmatpush1.xpose.msra.mxu0 0.0
        %723 = vmatprep.subr.mxu0 0.0
        %724 = vmatpush1.xpose.msra.mxu0 %v691
        %725 = vmatprep.subr.mxu0 0.0
        %726 = vmatpush2.xpose.msra.mxu0 0.0
        %727 = vmatprep.subr.mxu0 0.0
        %728 = vmatpush2.xpose.msra.mxu0 0.0
        %729 = vmatprep.subr.mxu0 0.0
        %730 = vmatpush2.xpose.msra.mxu0 0.0
        %731 = vmatprep.subr.mxu0 0.0
        %732 = vmatpush2.xpose.msra.mxu0 0.0
        %733 = vmatprep.subr.mxu0 0.0
        %734 = vmatpush2.xpose.msra.mxu0 0.0
        %735 = vmatprep.subr.mxu0 0.0
        %736 = vmatpush2.xpose.msra.mxu0 0.0
        %737 = vmatprep.subr.mxu0 0.0
        %738 = vmatpush2.xpose.msra.mxu0 0.0
        %739 = vmatprep.subr.mxu0 0.0
        %740 = vmatpush2.xpose.msra.mxu0 0.0
        %741 = vmatprep.subr.mxu0 0.0
        %742 = vmatpush2.xpose.msra.mxu0 0.0
        %743 = vmatprep.subr.mxu0 0.0
        %744 = vmatpush2.xpose.msra.mxu0 0.0
        %745 = vmatprep.subr.mxu0 0.0
        %746 = vmatpush2.xpose.msra.mxu0 0.0
        %747 = vmatprep.subr.mxu0 0.0
        %748 = vmatpush2.xpose.msra.mxu0 0.0
        %749 = vmatprep.subr.mxu0 0.0
        %750 = vmatpush2.xpose.msra.mxu0 0.0
        %751 = vmatprep.subr.mxu0 0.0
        %752 = vmatpush2.xpose.msra.mxu0 0.0
        %753 = vmatprep.subr.mxu0 0.0
        %754 = vmatpush2.xpose.msra.mxu0 0.0
        %755 = vmatprep.subr.mxu0 0.0
        %756 = vmatpush2.xpose.msra.mxu0 0.0
        %757 = vmatprep.mubr.f32.mxu0 0.0
        %758 = vmatmul.mubr.f32.gmra.mxu0 %v688
        %v759 = vpop.f32.mrf.mxu0
        %v760 = vadd.f32 0.0, %v759
        %v761 = vpop.f32.mrf.mxu0
        %762 = vdwg.mxu0
        %v763 = vsel %vm686, %v760, -inf
        %764 = vmax.xlane.f32.xlu0 %v763
        %v765 = vpop.xlane.xlu0 %764
        %v766 = vsub.f32 %v760, %v765
        %v767 = vmul.f32 %v766, 1.442695
        %v768 = vpow.pop %v767
        %v769 = vsel %vm686, %v768, 0.0
        %770 = vadd.xlane.f32.xlu0 %v769
        %v771 = vpop.xlane.xlu0 %770
        %v772 = vrcp.pop %v771
        %v773 = vmul.f32 %v768, %v772
        %v775 = vsel %vm686, %v773, 0
        %777 = vmatprep.subr.mxu0 0.0
        %778 = vmatpush1.msra.mxu0 0.0
        %779 = vmatprep.subr.mxu0 0.0
        %780 = vmatpush1.msra.mxu0 0.0
        %781 = vmatprep.subr.mxu0 0.0
        %782 = vmatpush1.msra.mxu0 0.0
        %783 = vmatprep.subr.mxu0 0.0
        %784 = vmatpush1.msra.mxu0 0.0
        %785 = vmatprep.subr.mxu0 0.0
        %786 = vmatpush1.msra.mxu0 0.0
        %787 = vmatprep.subr.mxu0 0.0
        %788 = vmatpush1.msra.mxu0 0.0
        %789 = vmatprep.subr.mxu0 0.0
        %790 = vmatpush1.msra.mxu0 0.0
        %791 = vmatprep.subr.mxu0 0.0
        %792 = vmatpush1.msra.mxu0 0.0
        %793 = vmatprep.subr.mxu0 0.0
        %794 = vmatpush1.msra.mxu0 0.0
        %795 = vmatprep.subr.mxu0 0.0
        %796 = vmatpush1.msra.mxu0 0.0
        %797 = vmatprep.subr.mxu0 0.0
        %798 = vmatpush1.msra.mxu0 0.0
        %799 = vmatprep.subr.mxu0 0.0
        %800 = vmatpush1.msra.mxu0 0.0
        %801 = vmatprep.subr.mxu0 0.0
        %802 = vmatpush1.msra.mxu0 0.0
        %803 = vmatprep.subr.mxu0 0.0
        %804 = vmatpush1.msra.mxu0 0.0
        %805 = vmatprep.subr.mxu0 0.0
        %806 = vmatpush1.msra.mxu0 0.0
        %807 = vmatprep.subr.mxu0 0.0
        %808 = vmatpush1.msra.mxu0 %v682
        %809 = vmatprep.subr.mxu0 0.0
        %810 = vmatpush2.msra.mxu0 0.0
        %811 = vmatprep.subr.mxu0 0.0
        %812 = vmatpush2.msra.mxu0 0.0
        %813 = vmatprep.subr.mxu0 0.0
        %814 = vmatpush2.msra.mxu0 0.0
        %815 = vmatprep.subr.mxu0 0.0
        %816 = vmatpush2.msra.mxu0 0.0
        %817 = vmatprep.subr.mxu0 0.0
        %818 = vmatpush2.msra.mxu0 0.0
        %819 = vmatprep.subr.mxu0 0.0
        %820 = vmatpush2.msra.mxu0 0.0
        %821 = vmatprep.subr.mxu0 0.0
        %822 = vmatpush2.msra.mxu0 0.0
        %823 = vmatprep.subr.mxu0 0.0
        %824 = vmatpush2.msra.mxu0 0.0
        %825 = vmatprep.subr.mxu0 0.0
        %826 = vmatpush2.msra.mxu0 0.0
        %827 = vmatprep.subr.mxu0 0.0
        %828 = vmatpush2.msra.mxu0 0.0
        %829 = vmatprep.subr.mxu0 0.0
        %830 = vmatpush2.msra.mxu0 0.0
        %831 = vmatprep.subr.mxu0 0.0
        %832 = vmatpush2.msra.mxu0 0.0
        %833 = vmatprep.subr.mxu0 0.0
        %834 = vmatpush2.msra.mxu0 0.0
        %835 = vmatprep.subr.mxu0 0.0
        %836 = vmatpush2.msra.mxu0 0.0
        %837 = vmatprep.subr.mxu0 0.0
        %838 = vmatpush2.msra.mxu0 0.0
        %839 = vmatprep.subr.mxu0 0.0
        %840 = vmatpush2.msra.mxu0 0.0
        %841 = vmatprep.mubr.f32.mxu0 0.0
        %842 = vmatmul.mubr.f32.gmra.mxu0 %v775
        %v843 = vpop.f32.mrf.mxu0
        %v844 = vadd.f32 0.0, %v843
        %v845 = vpop.f32.mrf.mxu0
        %846 = vdwg.mxu0
        %847 = vrot.lane.b32.xlu0 %v685, 120
        %v848 = vpop.permute.xlu0 %847
        %849 = vrot.lane.b32.xlu0 %v605, 120
        %v850 = vpop.permute.xlu0 %849
        %v851 = vsel %vm686, %v848, 0
        %v853 = vsel %vm686, %v850, 0
        %855 = vmatprep.subr.mxu0 0.0
        %856 = vmatpush1.xpose.msra.mxu0 0.0
        %857 = vmatprep.subr.mxu0 0.0
        %858 = vmatpush1.xpose.msra.mxu0 0.0
        %859 = vmatprep.subr.mxu0 0.0
        %860 = vmatpush1.xpose.msra.mxu0 0.0
        %861 = vmatprep.subr.mxu0 0.0
        %862 = vmatpush1.xpose.msra.mxu0 0.0
        %863 = vmatprep.subr.mxu0 0.0
        %864 = vmatpush1.xpose.msra.mxu0 0.0
        %865 = vmatprep.subr.mxu0 0.0
        %866 = vmatpush1.xpose.msra.mxu0 0.0
        %867 = vmatprep.subr.mxu0 0.0
        %868 = vmatpush1.xpose.msra.mxu0 0.0
        %869 = vmatprep.subr.mxu0 0.0
        %870 = vmatpush1.xpose.msra.mxu0 0.0
        %871 = vmatprep.subr.mxu0 0.0
        %872 = vmatpush1.xpose.msra.mxu0 0.0
        %873 = vmatprep.subr.mxu0 0.0
        %874 = vmatpush1.xpose.msra.mxu0 0.0
        %875 = vmatprep.subr.mxu0 0.0
        %876 = vmatpush1.xpose.msra.mxu0 0.0
        %877 = vmatprep.subr.mxu0 0.0
        %878 = vmatpush1.xpose.msra.mxu0 0.0
        %879 = vmatprep.subr.mxu0 0.0
        %880 = vmatpush1.xpose.msra.mxu0 0.0
        %881 = vmatprep.subr.mxu0 0.0
        %882 = vmatpush1.xpose.msra.mxu0 0.0
        %883 = vmatprep.subr.mxu0 0.0
        %884 = vmatpush1.xpose.msra.mxu0 0.0
        %885 = vmatprep.subr.mxu0 0.0
        %886 = vmatpush1.xpose.msra.mxu0 %v853
        %887 = vmatprep.subr.mxu0 0.0
        %888 = vmatpush2.xpose.msra.mxu0 0.0
        %889 = vmatprep.subr.mxu0 0.0
        %890 = vmatpush2.xpose.msra.mxu0 0.0
        %891 = vmatprep.subr.mxu0 0.0
        %892 = vmatpush2.xpose.msra.mxu0 0.0
        %893 = vmatprep.subr.mxu0 0.0
        %894 = vmatpush2.xpose.msra.mxu0 0.0
        %895 = vmatprep.subr.mxu0 0.0
        %896 = vmatpush2.xpose.msra.mxu0 0.0
        %897 = vmatprep.subr.mxu0 0.0
        %898 = vmatpush2.xpose.msra.mxu0 0.0
        %899 = vmatprep.subr.mxu0 0.0
        %900 = vmatpush2.xpose.msra.mxu0 0.0
        %901 = vmatprep.subr.mxu0 0.0
        %902 = vmatpush2.xpose.msra.mxu0 0.0
        %903 = vmatprep.subr.mxu0 0.0
        %904 = vmatpush2.xpose.msra.mxu0 0.0
        %905 = vmatprep.subr.mxu0 0.0
        %906 = vmatpush2.xpose.msra.mxu0 0.0
        %907 = vmatprep.subr.mxu0 0.0
        %908 = vmatpush2.xpose.msra.mxu0 0.0
        %909 = vmatprep.subr.mxu0 0.0
        %910 = vmatpush2.xpose.msra.mxu0 0.0
        %911 = vmatprep.subr.mxu0 0.0
        %912 = vmatpush2.xpose.msra.mxu0 0.0
        %913 = vmatprep.subr.mxu0 0.0
        %914 = vmatpush2.xpose.msra.mxu0 0.0
        %915 = vmatprep.subr.mxu0 0.0
        %916 = vmatpush2.xpose.msra.mxu0 0.0
        %917 = vmatprep.subr.mxu0 0.0
        %918 = vmatpush2.xpose.msra.mxu0 0.0
        %919 = vmatprep.mubr.f32.mxu0 0.0
        %920 = vmatmul.mubr.f32.gmra.mxu0 %v851
        %v921 = vpop.f32.mrf.mxu0
        %v922 = vadd.f32 0.0, %v921
        %v923 = vpop.f32.mrf.mxu0
        %924 = vdwg.mxu0
        %v925 = vsel %vm686, %v922, -inf
        %926 = vmax.xlane.f32.xlu0 %v925
        %v927 = vpop.xlane.xlu0 %926
        %v928 = vsub.f32 %v922, %v927
        %v929 = vmul.f32 %v928, 1.442695
        %v930 = vpow.pop %v929
        %v931 = vsel %vm686, %v930, 0.0
        %932 = vadd.xlane.f32.xlu0 %v931
        %v933 = vpop.xlane.xlu0 %932
        %v934 = vrcp.pop %v933
        %v935 = vmul.f32 %v930, %v934
        %937 = vrot.lane.b32.xlu0 %v682, 120
        %v938 = vpop.permute.xlu0 %937
        %v941 = vsel %vm686, %v935, 0
        %943 = vmatprep.subr.mxu0 0.0
        %944 = vmatpush1.msra.mxu0 0.0
        %945 = vmatprep.subr.mxu0 0.0
        %946 = vmatpush1.msra.mxu0 0.0
        %947 = vmatprep.subr.mxu0 0.0
        %948 = vmatpush1.msra.mxu0 0.0
        %949 = vmatprep.subr.mxu0 0.0
        %950 = vmatpush1.msra.mxu0 0.0
        %951 = vmatprep.subr.mxu0 0.0
        %952 = vmatpush1.msra.mxu0 0.0
        %953 = vmatprep.subr.mxu0 0.0
        %954 = vmatpush1.msra.mxu0 0.0
        %955 = vmatprep.subr.mxu0 0.0
        %956 = vmatpush1.msra.mxu0 0.0
        %957 = vmatprep.subr.mxu0 0.0
        %958 = vmatpush1.msra.mxu0 0.0
        %959 = vmatprep.subr.mxu0 0.0
        %960 = vmatpush1.msra.mxu0 0.0
        %961 = vmatprep.subr.mxu0 0.0
        %962 = vmatpush1.msra.mxu0 0.0
        %963 = vmatprep.subr.mxu0 0.0
        %964 = vmatpush1.msra.mxu0 0.0
        %965 = vmatprep.subr.mxu0 0.0
        %966 = vmatpush1.msra.mxu0 0.0
        %967 = vmatprep.subr.mxu0 0.0
        %968 = vmatpush1.msra.mxu0 0.0
        %969 = vmatprep.subr.mxu0 0.0
        %970 = vmatpush1.msra.mxu0 0.0
        %971 = vmatprep.subr.mxu0 0.0
        %972 = vmatpush1.msra.mxu0 0.0
        %973 = vmatprep.subr.mxu0 0.0
        %974 = vmatpush1.msra.mxu0 %v938
        %975 = vmatprep.subr.mxu0 0.0
        %976 = vmatpush2.msra.mxu0 0.0
        %977 = vmatprep.subr.mxu0 0.0
        %978 = vmatpush2.msra.mxu0 0.0
        %979 = vmatprep.subr.mxu0 0.0
        %980 = vmatpush2.msra.mxu0 0.0
        %981 = vmatprep.subr.mxu0 0.0
        %982 = vmatpush2.msra.mxu0 0.0
        %983 = vmatprep.subr.mxu0 0.0
        %984 = vmatpush2.msra.mxu0 0.0
        %985 = vmatprep.subr.mxu0 0.0
        %986 = vmatpush2.msra.mxu0 0.0
        %987 = vmatprep.subr.mxu0 0.0
        %988 = vmatpush2.msra.mxu0 0.0
        %989 = vmatprep.subr.mxu0 0.0
        %990 = vmatpush2.msra.mxu0 0.0
        %991 = vmatprep.subr.mxu0 0.0
        %992 = vmatpush2.msra.mxu0 0.0
        %993 = vmatprep.subr.mxu0 0.0
        %994 = vmatpush2.msra.mxu0 0.0
        %995 = vmatprep.subr.mxu0 0.0
        %996 = vmatpush2.msra.mxu0 0.0
        %997 = vmatprep.subr.mxu0 0.0
        %998 = vmatpush2.msra.mxu0 0.0
        %999 = vmatprep.subr.mxu0 0.0
        %1000 = vmatpush2.msra.mxu0 0.0
        %1001 = vmatprep.subr.mxu0 0.0
        %1002 = vmatpush2.msra.mxu0 0.0
        %1003 = vmatprep.subr.mxu0 0.0
        %1004 = vmatpush2.msra.mxu0 0.0
        %1005 = vmatprep.subr.mxu0 0.0
        %1006 = vmatpush2.msra.mxu0 0.0
        %1007 = vmatprep.mubr.f32.mxu0 0.0
        %1008 = vmatmul.mubr.f32.gmra.mxu0 %v941
        %v1009 = vpop.f32.mrf.mxu0
        %v1010 = vadd.f32 0.0, %v1009
        %v1011 = vpop.f32.mrf.mxu0
        %1012 = vdwg.mxu0
        %1013 = vrot.lane.b32.xlu0 %v685, 112
        %v1014 = vpop.permute.xlu0 %1013
        %1015 = vrot.lane.b32.xlu0 %v605, 112
        %v1016 = vpop.permute.xlu0 %1015
        %v1017 = vsel %vm686, %v1014, 0
        %v1019 = vsel %vm686, %v1016, 0
        %1021 = vmatprep.subr.mxu0 0.0
        %1022 = vmatpush1.xpose.msra.mxu0 0.0
        %1023 = vmatprep.subr.mxu0 0.0
        %1024 = vmatpush1.xpose.msra.mxu0 0.0
        %1025 = vmatprep.subr.mxu0 0.0
        %1026 = vmatpush1.xpose.msra.mxu0 0.0
        %1027 = vmatprep.subr.mxu0 0.0
        %1028 = vmatpush1.xpose.msra.mxu0 0.0
        %1029 = vmatprep.subr.mxu0 0.0
        %1030 = vmatpush1.xpose.msra.mxu0 0.0
        %1031 = vmatprep.subr.mxu0 0.0
        %1032 = vmatpush1.xpose.msra.mxu0 0.0
        %1033 = vmatprep.subr.mxu0 0.0
        %1034 = vmatpush1.xpose.msra.mxu0 0.0
        %1035 = vmatprep.subr.mxu0 0.0
        %1036 = vmatpush1.xpose.msra.mxu0 0.0
        %1037 = vmatprep.subr.mxu0 0.0
        %1038 = vmatpush1.xpose.msra.mxu0 0.0
        %1039 = vmatprep.subr.mxu0 0.0
        %1040 = vmatpush1.xpose.msra.mxu0 0.0
        %1041 = vmatprep.subr.mxu0 0.0
        %1042 = vmatpush1.xpose.msra.mxu0 0.0
        %1043 = vmatprep.subr.mxu0 0.0
        %1044 = vmatpush1.xpose.msra.mxu0 0.0
        %1045 = vmatprep.subr.mxu0 0.0
        %1046 = vmatpush1.xpose.msra.mxu0 0.0
        %1047 = vmatprep.subr.mxu0 0.0
        %1048 = vmatpush1.xpose.msra.mxu0 0.0
        %1049 = vmatprep.subr.mxu0 0.0
        %1050 = vmatpush1.xpose.msra.mxu0 0.0
        %1051 = vmatprep.subr.mxu0 0.0
        %1052 = vmatpush1.xpose.msra.mxu0 %v1019
        %1053 = vmatprep.subr.mxu0 0.0
        %1054 = vmatpush2.xpose.msra.mxu0 0.0
        %1055 = vmatprep.subr.mxu0 0.0
        %1056 = vmatpush2.xpose.msra.mxu0 0.0
        %1057 = vmatprep.subr.mxu0 0.0
        %1058 = vmatpush2.xpose.msra.mxu0 0.0
        %1059 = vmatprep.subr.mxu0 0.0
        %1060 = vmatpush2.xpose.msra.mxu0 0.0
        %1061 = vmatprep.subr.mxu0 0.0
        %1062 = vmatpush2.xpose.msra.mxu0 0.0
        %1063 = vmatprep.subr.mxu0 0.0
        %1064 = vmatpush2.xpose.msra.mxu0 0.0
        %1065 = vmatprep.subr.mxu0 0.0
        %1066 = vmatpush2.xpose.msra.mxu0 0.0
        %1067 = vmatprep.subr.mxu0 0.0
        %1068 = vmatpush2.xpose.msra.mxu0 0.0
        %1069 = vmatprep.subr.mxu0 0.0
        %1070 = vmatpush2.xpose.msra.mxu0 0.0
        %1071 = vmatprep.subr.mxu0 0.0
        %1072 = vmatpush2.xpose.msra.mxu0 0.0
        %1073 = vmatprep.subr.mxu0 0.0
        %1074 = vmatpush2.xpose.msra.mxu0 0.0
        %1075 = vmatprep.subr.mxu0 0.0
        %1076 = vmatpush2.xpose.msra.mxu0 0.0
        %1077 = vmatprep.subr.mxu0 0.0
        %1078 = vmatpush2.xpose.msra.mxu0 0.0
        %1079 = vmatprep.subr.mxu0 0.0
        %1080 = vmatpush2.xpose.msra.mxu0 0.0
        %1081 = vmatprep.subr.mxu0 0.0
        %1082 = vmatpush2.xpose.msra.mxu0 0.0
        %1083 = vmatprep.subr.mxu0 0.0
        %1084 = vmatpush2.xpose.msra.mxu0 0.0
        %1085 = vmatprep.mubr.f32.mxu0 0.0
        %1086 = vmatmul.mubr.f32.gmra.mxu0 %v1017
        %v1087 = vpop.f32.mrf.mxu0
        %v1088 = vadd.f32 0.0, %v1087
        %v1089 = vpop.f32.mrf.mxu0
        %1090 = vdwg.mxu0
        %v1091 = vsel %vm686, %v1088, -inf
        %1092 = vmax.xlane.f32.xlu0 %v1091
        %v1093 = vpop.xlane.xlu0 %1092
        %v1094 = vsub.f32 %v1088, %v1093
        %v1095 = vmul.f32 %v1094, 1.442695
        %v1096 = vpow.pop %v1095
        %v1097 = vsel %vm686, %v1096, 0.0
        %1098 = vadd.xlane.f32.xlu0 %v1097
        %v1099 = vpop.xlane.xlu0 %1098
        %v1100 = vrcp.pop %v1099
        %v1101 = vmul.f32 %v1096, %v1100
        %1102 = vrot.lane.b32.xlu0 %v682, 112
        %v1103 = vpop.permute.xlu0 %1102
        %v1106 = vsel %vm686, %v1101, 0
        %1108 = vmatprep.subr.mxu0 0.0
        %1109 = vmatpush1.msra.mxu0 0.0
        %1110 = vmatprep.subr.mxu0 0.0
        %1111 = vmatpush1.msra.mxu0 0.0
        %1112 = vmatprep.subr.mxu0 0.0
        %1113 = vmatpush1.msra.mxu0 0.0
        %1114 = vmatprep.subr.mxu0 0.0
        %1115 = vmatpush1.msra.mxu0 0.0
        %1116 = vmatprep.subr.mxu0 0.0
        %1117 = vmatpush1.msra.mxu0 0.0
        %1118 = vmatprep.subr.mxu0 0.0
        %1119 = vmatpush1.msra.mxu0 0.0
        %1120 = vmatprep.subr.mxu0 0.0
        %1121 = vmatpush1.msra.mxu0 0.0
        %1122 = vmatprep.subr.mxu0 0.0
        %1123 = vmatpush1.msra.mxu0 0.0
        %1124 = vmatprep.subr.mxu0 0.0
        %1125 = vmatpush1.msra.mxu0 0.0
        %1126 = vmatprep.subr.mxu0 0.0
        %1127 = vmatpush1.msra.mxu0 0.0
        %1128 = vmatprep.subr.mxu0 0.0
        %1129 = vmatpush1.msra.mxu0 0.0
        %1130 = vmatprep.subr.mxu0 0.0
        %1131 = vmatpush1.msra.mxu0 0.0
        %1132 = vmatprep.subr.mxu0 0.0
        %1133 = vmatpush1.msra.mxu0 0.0
        %1134 = vmatprep.subr.mxu0 0.0
        %1135 = vmatpush1.msra.mxu0 0.0
        %1136 = vmatprep.subr.mxu0 0.0
        %1137 = vmatpush1.msra.mxu0 0.0
        %1138 = vmatprep.subr.mxu0 0.0
        %1139 = vmatpush1.msra.mxu0 %v1103
        %1140 = vmatprep.subr.mxu0 0.0
        %1141 = vmatpush2.msra.mxu0 0.0
        %1142 = vmatprep.subr.mxu0 0.0
        %1143 = vmatpush2.msra.mxu0 0.0
        %1144 = vmatprep.subr.mxu0 0.0
        %1145 = vmatpush2.msra.mxu0 0.0
        %1146 = vmatprep.subr.mxu0 0.0
        %1147 = vmatpush2.msra.mxu0 0.0
        %1148 = vmatprep.subr.mxu0 0.0
        %1149 = vmatpush2.msra.mxu0 0.0
        %1150 = vmatprep.subr.mxu0 0.0
        %1151 = vmatpush2.msra.mxu0 0.0
        %1152 = vmatprep.subr.mxu0 0.0
        %1153 = vmatpush2.msra.mxu0 0.0
        %1154 = vmatprep.subr.mxu0 0.0
        %1155 = vmatpush2.msra.mxu0 0.0
        %1156 = vmatprep.subr.mxu0 0.0
        %1157 = vmatpush2.msra.mxu0 0.0
        %1158 = vmatprep.subr.mxu0 0.0
        %1159 = vmatpush2.msra.mxu0 0.0
        %1160 = vmatprep.subr.mxu0 0.0
        %1161 = vmatpush2.msra.mxu0 0.0
        %1162 = vmatprep.subr.mxu0 0.0
        %1163 = vmatpush2.msra.mxu0 0.0
        %1164 = vmatprep.subr.mxu0 0.0
        %1165 = vmatpush2.msra.mxu0 0.0
        %1166 = vmatprep.subr.mxu0 0.0
        %1167 = vmatpush2.msra.mxu0 0.0
        %1168 = vmatprep.subr.mxu0 0.0
        %1169 = vmatpush2.msra.mxu0 0.0
        %1170 = vmatprep.subr.mxu0 0.0
        %1171 = vmatpush2.msra.mxu0 0.0
        %1172 = vmatprep.mubr.f32.mxu0 0.0
        %1173 = vmatmul.mubr.f32.gmra.mxu0 %v1106
        %v1174 = vpop.f32.mrf.mxu0
        %v1175 = vadd.f32 0.0, %v1174
        %v1176 = vpop.f32.mrf.mxu0
        %1177 = vdwg.mxu0
        %1178 = vrot.lane.b32.xlu0 %v685, 104
        %v1179 = vpop.permute.xlu0 %1178
        %1180 = vrot.lane.b32.xlu0 %v605, 104
        %v1181 = vpop.permute.xlu0 %1180
        %v1182 = vsel %vm686, %v1179, 0
        %v1184 = vsel %vm686, %v1181, 0
        %1186 = vmatprep.subr.mxu0 0.0
        %1187 = vmatpush1.xpose.msra.mxu0 0.0
        %1188 = vmatprep.subr.mxu0 0.0
        %1189 = vmatpush1.xpose.msra.mxu0 0.0
        %1190 = vmatprep.subr.mxu0 0.0
        %1191 = vmatpush1.xpose.msra.mxu0 0.0
        %1192 = vmatprep.subr.mxu0 0.0
        %1193 = vmatpush1.xpose.msra.mxu0 0.0
        %1194 = vmatprep.subr.mxu0 0.0
        %1195 = vmatpush1.xpose.msra.mxu0 0.0
        %1196 = vmatprep.subr.mxu0 0.0
        %1197 = vmatpush1.xpose.msra.mxu0 0.0
        %1198 = vmatprep.subr.mxu0 0.0
        %1199 = vmatpush1.xpose.msra.mxu0 0.0
        %1200 = vmatprep.subr.mxu0 0.0
        %1201 = vmatpush1.xpose.msra.mxu0 0.0
        %1202 = vmatprep.subr.mxu0 0.0
        %1203 = vmatpush1.xpose.msra.mxu0 0.0
        %1204 = vmatprep.subr.mxu0 0.0
        %1205 = vmatpush1.xpose.msra.mxu0 0.0
        %1206 = vmatprep.subr.mxu0 0.0
        %1207 = vmatpush1.xpose.msra.mxu0 0.0
        %1208 = vmatprep.subr.mxu0 0.0
        %1209 = vmatpush1.xpose.msra.mxu0 0.0
        %1210 = vmatprep.subr.mxu0 0.0
        %1211 = vmatpush1.xpose.msra.mxu0 0.0
        %1212 = vmatprep.subr.mxu0 0.0
        %1213 = vmatpush1.xpose.msra.mxu0 0.0
        %1214 = vmatprep.subr.mxu0 0.0
        %1215 = vmatpush1.xpose.msra.mxu0 0.0
        %1216 = vmatprep.subr.mxu0 0.0
        %1217 = vmatpush1.xpose.msra.mxu0 %v1184
        %1218 = vmatprep.subr.mxu0 0.0
        %1219 = vmatpush2.xpose.msra.mxu0 0.0
        %1220 = vmatprep.subr.mxu0 0.0
        %1221 = vmatpush2.xpose.msra.mxu0 0.0
        %1222 = vmatprep.subr.mxu0 0.0
        %1223 = vmatpush2.xpose.msra.mxu0 0.0
        %1224 = vmatprep.subr.mxu0 0.0
        %1225 = vmatpush2.xpose.msra.mxu0 0.0
        %1226 = vmatprep.subr.mxu0 0.0
        %1227 = vmatpush2.xpose.msra.mxu0 0.0
        %1228 = vmatprep.subr.mxu0 0.0
        %1229 = vmatpush2.xpose.msra.mxu0 0.0
        %1230 = vmatprep.subr.mxu0 0.0
        %1231 = vmatpush2.xpose.msra.mxu0 0.0
        %1232 = vmatprep.subr.mxu0 0.0
        %1233 = vmatpush2.xpose.msra.mxu0 0.0
        %1234 = vmatprep.subr.mxu0 0.0
        %1235 = vmatpush2.xpose.msra.mxu0 0.0
        %1236 = vmatprep.subr.mxu0 0.0
        %1237 = vmatpush2.xpose.msra.mxu0 0.0
        %1238 = vmatprep.subr.mxu0 0.0
        %1239 = vmatpush2.xpose.msra.mxu0 0.0
        %1240 = vmatprep.subr.mxu0 0.0
        %1241 = vmatpush2.xpose.msra.mxu0 0.0
        %1242 = vmatprep.subr.mxu0 0.0
        %1243 = vmatpush2.xpose.msra.mxu0 0.0
        %1244 = vmatprep.subr.mxu0 0.0
        %1245 = vmatpush2.xpose.msra.mxu0 0.0
        %1246 = vmatprep.subr.mxu0 0.0
        %1247 = vmatpush2.xpose.msra.mxu0 0.0
        %1248 = vmatprep.subr.mxu0 0.0
        %1249 = vmatpush2.xpose.msra.mxu0 0.0
        %1250 = vmatprep.mubr.f32.mxu0 0.0
        %1251 = vmatmul.mubr.f32.gmra.mxu0 %v1182
        %v1252 = vpop.f32.mrf.mxu0
        %v1253 = vadd.f32 0.0, %v1252
        %v1254 = vpop.f32.mrf.mxu0
        %1255 = vdwg.mxu0
        %v1256 = vsel %vm686, %v1253, -inf
        %1257 = vmax.xlane.f32.xlu0 %v1256
        %v1258 = vpop.xlane.xlu0 %1257
        %v1259 = vsub.f32 %v1253, %v1258
        %v1260 = vmul.f32 %v1259, 1.442695
        %v1261 = vpow.pop %v1260
        %v1262 = vsel %vm686, %v1261, 0.0
        %1263 = vadd.xlane.f32.xlu0 %v1262
        %v1264 = vpop.xlane.xlu0 %1263
        %v1265 = vrcp.pop %v1264
        %v1266 = vmul.f32 %v1261, %v1265
        %1267 = vrot.lane.b32.xlu0 %v682, 104
        %v1268 = vpop.permute.xlu0 %1267
        %v1271 = vsel %vm686, %v1266, 0
        %1273 = vmatprep.subr.mxu0 0.0
        %1274 = vmatpush1.msra.mxu0 0.0
        %1275 = vmatprep.subr.mxu0 0.0
        %1276 = vmatpush1.msra.mxu0 0.0
        %1277 = vmatprep.subr.mxu0 0.0
        %1278 = vmatpush1.msra.mxu0 0.0
        %1279 = vmatprep.subr.mxu0 0.0
        %1280 = vmatpush1.msra.mxu0 0.0
        %1281 = vmatprep.subr.mxu0 0.0
        %1282 = vmatpush1.msra.mxu0 0.0
        %1283 = vmatprep.subr.mxu0 0.0
        %1284 = vmatpush1.msra.mxu0 0.0
        %1285 = vmatprep.subr.mxu0 0.0
        %1286 = vmatpush1.msra.mxu0 0.0
        %1287 = vmatprep.subr.mxu0 0.0
        %1288 = vmatpush1.msra.mxu0 0.0
        %1289 = vmatprep.subr.mxu0 0.0
        %1290 = vmatpush1.msra.mxu0 0.0
        %1291 = vmatprep.subr.mxu0 0.0
        %1292 = vmatpush1.msra.mxu0 0.0
        %1293 = vmatprep.subr.mxu0 0.0
        %1294 = vmatpush1.msra.mxu0 0.0
        %1295 = vmatprep.subr.mxu0 0.0
        %1296 = vmatpush1.msra.mxu0 0.0
        %1297 = vmatprep.subr.mxu0 0.0
        %1298 = vmatpush1.msra.mxu0 0.0
        %1299 = vmatprep.subr.mxu0 0.0
        %1300 = vmatpush1.msra.mxu0 0.0
        %1301 = vmatprep.subr.mxu0 0.0
        %1302 = vmatpush1.msra.mxu0 0.0
        %1303 = vmatprep.subr.mxu0 0.0
        %1304 = vmatpush1.msra.mxu0 %v1268
        %1305 = vmatprep.subr.mxu0 0.0
        %1306 = vmatpush2.msra.mxu0 0.0
        %1307 = vmatprep.subr.mxu0 0.0
        %1308 = vmatpush2.msra.mxu0 0.0
        %1309 = vmatprep.subr.mxu0 0.0
        %1310 = vmatpush2.msra.mxu0 0.0
        %1311 = vmatprep.subr.mxu0 0.0
        %1312 = vmatpush2.msra.mxu0 0.0
        %1313 = vmatprep.subr.mxu0 0.0
        %1314 = vmatpush2.msra.mxu0 0.0
        %1315 = vmatprep.subr.mxu0 0.0
        %1316 = vmatpush2.msra.mxu0 0.0
        %1317 = vmatprep.subr.mxu0 0.0
        %1318 = vmatpush2.msra.mxu0 0.0
        %1319 = vmatprep.subr.mxu0 0.0
        %1320 = vmatpush2.msra.mxu0 0.0
        %1321 = vmatprep.subr.mxu0 0.0
        %1322 = vmatpush2.msra.mxu0 0.0
        %1323 = vmatprep.subr.mxu0 0.0
        %1324 = vmatpush2.msra.mxu0 0.0
        %1325 = vmatprep.subr.mxu0 0.0
        %1326 = vmatpush2.msra.mxu0 0.0
        %1327 = vmatprep.subr.mxu0 0.0
        %1328 = vmatpush2.msra.mxu0 0.0
        %1329 = vmatprep.subr.mxu0 0.0
        %1330 = vmatpush2.msra.mxu0 0.0
        %1331 = vmatprep.subr.mxu0 0.0
        %1332 = vmatpush2.msra.mxu0 0.0
        %1333 = vmatprep.subr.mxu0 0.0
        %1334 = vmatpush2.msra.mxu0 0.0
        %1335 = vmatprep.subr.mxu0 0.0
        %1336 = vmatpush2.msra.mxu0 0.0
        %1337 = vmatprep.mubr.f32.mxu0 0.0
        %1338 = vmatmul.mubr.f32.gmra.mxu0 %v1271
        %v1339 = vpop.f32.mrf.mxu0
        %v1340 = vadd.f32 0.0, %v1339
        %v1341 = vpop.f32.mrf.mxu0
        %1342 = vdwg.mxu0
        %1344 = vrot.lane.b32.xlu0 %v1010, 8
        %v1345 = vpop.permute.xlu0 %1344
        %1348 = vrot.lane.b32.xlu0 %v1175, 16
        %v1349 = vpop.permute.xlu0 %1348
        %1352 = vrot.lane.b32.xlu0 %v1340, 24
        %v1353 = vpop.permute.xlu0 %1352
        %v1355 = vsel %vm686, %v844, %v1345
        %vm1356 = vcmask 130048
        %v1357 = vsel %vm1356, %v1355, %v1349
        %vm1358 = vcmask 195584
        %v1359 = vsel %vm1358, %v1357, %v1353
        %v1360 = vld [vmem:[#allocation13] sm:$0xff]
        %v1361 = vld [vmem:[#allocation13 + $0x8] sm:$0xff]
        %v1362 = vld [vmem:[#allocation13 + $0x10] sm:$0xff]
        %v1363 = vld [vmem:[#allocation13 + $0x18] sm:$0xff]
        %v1364 = vld [vmem:[%s7] sm:$0x1]
        %v1366 = vlaneseq
        %v1367 = vshrl.u32 %v1366, 7
        %v1368 = vsub.s32 0, %v1367
        %v1369 = vrot.slane %v1364, %v1368
        %v1372 = vsel %vm457, %v1359, 0
        %1374 = vmatprep.subr.mxu0 0.0
        %1375 = vmatpush1.msra.mxu0 0.0
        %1376 = vmatprep.subr.mxu0 0.0
        %1377 = vmatpush1.msra.mxu0 0.0
        %1378 = vmatprep.subr.mxu0 0.0
        %1379 = vmatpush1.msra.mxu0 0.0
        %1380 = vmatprep.subr.mxu0 0.0
        %1381 = vmatpush1.msra.mxu0 0.0
        %1382 = vmatprep.subr.mxu0 0.0
        %1383 = vmatpush1.msra.mxu0 0.0
        %1384 = vmatprep.subr.mxu0 0.0
        %1385 = vmatpush1.msra.mxu0 0.0
        %1386 = vmatprep.subr.mxu0 0.0
        %1387 = vmatpush1.msra.mxu0 0.0
        %1388 = vmatprep.subr.mxu0 0.0
        %1389 = vmatpush1.msra.mxu0 0.0
        %1390 = vmatprep.subr.mxu0 0.0
        %1391 = vmatpush1.msra.mxu0 0.0
        %1392 = vmatprep.subr.mxu0 0.0
        %1393 = vmatpush1.msra.mxu0 0.0
        %1394 = vmatprep.subr.mxu0 0.0
        %1395 = vmatpush1.msra.mxu0 0.0
        %1396 = vmatprep.subr.mxu0 0.0
        %1397 = vmatpush1.msra.mxu0 0.0
        %1398 = vmatprep.subr.mxu0 0.0
        %1399 = vmatpush1.msra.mxu0 %v1363
        %1400 = vmatprep.subr.mxu0 0.0
        %1401 = vmatpush1.msra.mxu0 %v1362
        %1402 = vmatprep.subr.mxu0 0.0
        %1403 = vmatpush1.msra.mxu0 %v1361
        %1404 = vmatprep.subr.mxu0 0.0
        %1405 = vmatpush1.msra.mxu0 %v1360
        %1406 = vmatprep.subr.mxu0 0.0
        %1407 = vmatpush2.msra.mxu0 0.0
        %1408 = vmatprep.subr.mxu0 0.0
        %1409 = vmatpush2.msra.mxu0 0.0
        %1410 = vmatprep.subr.mxu0 0.0
        %1411 = vmatpush2.msra.mxu0 0.0
        %1412 = vmatprep.subr.mxu0 0.0
        %1413 = vmatpush2.msra.mxu0 0.0
        %1414 = vmatprep.subr.mxu0 0.0
        %1415 = vmatpush2.msra.mxu0 0.0
        %1416 = vmatprep.subr.mxu0 0.0
        %1417 = vmatpush2.msra.mxu0 0.0
        %1418 = vmatprep.subr.mxu0 0.0
        %1419 = vmatpush2.msra.mxu0 0.0
        %1420 = vmatprep.subr.mxu0 0.0
        %1421 = vmatpush2.msra.mxu0 0.0
        %1422 = vmatprep.subr.mxu0 0.0
        %1423 = vmatpush2.msra.mxu0 0.0
        %1424 = vmatprep.subr.mxu0 0.0
        %1425 = vmatpush2.msra.mxu0 0.0
        %1426 = vmatprep.subr.mxu0 0.0
        %1427 = vmatpush2.msra.mxu0 0.0
        %1428 = vmatprep.subr.mxu0 0.0
        %1429 = vmatpush2.msra.mxu0 0.0
        %1430 = vmatprep.subr.mxu0 0.0
        %1431 = vmatpush2.msra.mxu0 0.0
        %1432 = vmatprep.subr.mxu0 0.0
        %1433 = vmatpush2.msra.mxu0 0.0
        %1434 = vmatprep.subr.mxu0 0.0
        %1435 = vmatpush2.msra.mxu0 0.0
        %1436 = vmatprep.subr.mxu0 0.0
        %1437 = vmatpush2.msra.mxu0 0.0
        %1438 = vmatprep.mubr.f32.mxu0 0.0
        %1439 = vmatmul.mubr.f32.gmra.mxu0 %v1372
        %v1440 = vpop.f32.mrf.mxu0
        %v1441 = vadd.f32 %v1369, %v1440
        %v1442 = vpop.f32.mrf.mxu0
        %1443 = vdwg.mxu0
        %1444 = vst.msk [vmem:[%s449] sm:$0xff] %vm457, %v1441
        %s1445 = sand.u32 %s221, 1
        %s1446 = scalar_lea.sflag [#allocation4], %s1445
        %s1447 = sand.u32 %s221, 1
        %s1448 = smul.addr %s1447, 8
        %s1449 = scalar_lea.vmem [#allocation14], %s1448
        // Predicated region
        $region81: #{tpu_custom_call.1} parent=51 // pred_check
          %p1450 = pneg %p231
        $region82: #{tpu_custom_call.1} parent=51 // pred_check_branch
          %1452 = sbr.rel (%p1450) target = $region84
        $region83: #{tpu_custom_call.1} parent=51 // pred_region
          %s1454 = ssub.s32 128, 128
          %1455 = vsyncadd %s1446, %s1454
          %s1456 = smul.addr %s30, 128
          %s1457 = scalar_lea.hbm %s8, %s1456
          %s1459 = sshll.u32 %s1449, 4
          %s1460 = int_to_ptr.vmem [resolvable:$true] %s1459
          %1462 = dma.vmem_to_hbm [thread:$0]  %s1460, 128, %s1457, %s1446
        $region84: #{tpu_custom_call.1} parent=51 // pred_fallthru
          _
      $region52: #{tpu_custom_call.1} parent=5 // pred_fallthru
        _
      %p1463 = scmp.le.s32.totalorder 2, %s25
      // Predicated region
      $region85: #{tpu_custom_call.1} parent=5 // pred_check
        %p1464 = pneg %p1463
      $region86: #{tpu_custom_call.1} parent=5 // pred_check_branch
        %1466 = sbr.rel (%p1464) target = $region88
      $region87: #{tpu_custom_call.1} parent=5 // pred_region
        %s1467 = ssub.s32 %s25, 2
        // Predicated region
        $region89: #{tpu_custom_call.1} parent=87 // pred_check
          %p1468 = pneg %p237
        $region90: #{tpu_custom_call.1} parent=87 // pred_check_branch
          %1470 = sbr.rel (%p1468) target = $region92
        $region91: #{tpu_custom_call.1} parent=87 // pred_region
          %s1471 = sand.u32 %s222, 1
          %s1472 = scalar_lea.sflag [#allocation4], %s1471
          %s1473 = sand.u32 %s222, 1
          %s1474 = smul.addr %s1473, 8
          %s1475 = scalar_lea.vmem [#allocation14], %s1474
          %1476 = dma.done %s1472, 128
        $region92: #{tpu_custom_call.1} parent=87 // pred_fallthru
          _
      $region88: #{tpu_custom_call.1} parent=5 // pred_fallthru
        _
    $region6: #{tpu_custom_call.1} parent=1 // loop_footer
      %s29 = sadd.s32 1, %s25
    $region7: #{tpu_custom_call.1} parent=1 // loop_footer_branch
      %24 = sbr.rel target = $region3
    $region8: #{tpu_custom_call.1} parent=1 // loop_exit
      _
    %1477 = vsyncpa [#allocation3], 1
    %s1478 = scalar_lea.sflag [#allocation3], 1
    %1479 = vsyncpa %s1478, 1
    %1480 = vsyncpa [#allocation6], 1
    %s1481 = scalar_lea.sflag [#allocation6], 1
    %1482 = vsyncpa %s1481, 1
    %1483 = vsyncpa [#allocation9], 1
    %1484 = vsyncpa [#allocation12], 1
    %1485 = vsyncpa [#allocation4], 1
    %s1486 = scalar_lea.sflag [#allocation4], 1
    %1487 = vsyncpa %s1486, 1

</llo_original>
